<compile_context>
chip_gen: v6e
topology: v6e:2x2x1
jax: 0.10.0
libtpu: 0.0.40
codegen_flags: <defaults>
</compile_context>

<pallas_src>
import jax
import jax.numpy as jnp
from jax.experimental import pallas as pl
from jax.experimental.pallas import tpu as pltpu

BASIS = 16
LANE = 128  # pad head output to a multiple of this for a lane-dense store


def _round_up(x, m):
    return ((x + m - 1) // m) * m


# ----------------------------------------------------------------------------
# Fused kernel: 3 x (linear + task-adaptive activation) + padded linear head.
# One grid axis over batch tiles; all weights resident in VMEM.
# ----------------------------------------------------------------------------
def _taan_fused_kernel(x_ref, w1_ref, b1_ref, w2_ref, b2_ref, w3_ref, b3_ref,
                       wh_ref, bh_ref, alphas_ref, knots_ref, o_ref):
    # Hoist the SMEM scalar reads for the basis knots once.
    knots = [knots_ref[m] for m in range(BASIS)]

    def tal(h_lp, w_ref, b_ref, layer_idx):
        # bf16 x bf16 -> f32 on the MXU; bias + activation stay f32.
        z = jnp.dot(h_lp, w_ref[...], preferred_element_type=jnp.float32)
        z = z + b_ref[...]                                   # (TB, d_out) f32
        alphas = [alphas_ref[layer_idx, m] for m in range(BASIS)]
        # Two independent partial sums: ILP without 4 tile-sized live accs.
        p0 = alphas[0] * jnp.maximum(z - knots[0], 0.0)
        p1 = alphas[1] * jnp.maximum(z - knots[1], 0.0)
        for m in range(2, BASIS):                            # static unroll
            term = alphas[m] * jnp.maximum(z - knots[m], 0.0)
            if m % 2 == 0:
                p0 = p0 + term
            else:
                p1 = p1 + term
        return p0 + p1

    h = tal(x_ref[...], w1_ref, b1_ref, 0)
    h = tal(h.astype(jnp.bfloat16), w2_ref, b2_ref, 1)
    h = tal(h.astype(jnp.bfloat16), w3_ref, b3_ref, 2)
    logits = jnp.dot(h.astype(jnp.bfloat16), wh_ref[...],
                     preferred_element_type=jnp.float32) + bh_ref[...]
    o_ref[...] = logits.astype(o_ref.dtype)


def taan_forward(params, feature, task_id, *, block_b=512):
    """Fused TAAN forward. task_id is a static Python int (as in PyTorch)."""
    B, D_in = feature.shape
    head = params["heads"][task_id]
    num_classes = head["num_classes"]
    n_out = head["w_lp"].shape[1]                 # padded to multiple of 128
    H = params["layer1"]["w_lp"].shape[1]
    alphas = params["alpha_stacked"][task_id]     # (3, BASIS), static slice

    # Batch tile: multiple of 8 sublanes, capped so tiles fit scoped VMEM
    # comfortably on all of v5e / v6e / v7x.
    TB = min(block_b, _round_up(B, 8))
    n_tiles = pl.cdiv(B, TB)
    B_pad = n_tiles * TB

    x = feature.astype(jnp.bfloat16)              # halve the HBM input stream
    if B_pad != B:
        x = jnp.pad(x, ((0, B_pad - B), (0, 0)))

    const = lambda i: (0, 0)
    vmem_full = lambda shape: pl.BlockSpec(shape, const)
    smem = pl.BlockSpec(memory_space=pltpu.MemorySpace.SMEM)

    cost = pl.CostEstimate(
        flops=2 * B_pad * (D_in * H + 2 * H * H + H * n_out),
        transcendentals=0,
        bytes_accessed=(B_pad * D_in * 2 + B_pad * n_out * 4
                        + (D_in * H + 2 * H * H + H * n_out) * 2
                        + (3 * H + n_out) * 4),
    )

    out = pl.pallas_call(
        _taan_fused_kernel,
        out_shape=jax.ShapeDtypeStruct((B_pad, n_out), jnp.float32),
        grid=(n_tiles,),
        in_specs=[
            pl.BlockSpec((TB, D_in), lambda i: (i, 0)),      # feature tile
            vmem_full((D_in, H)), vmem_full((1, H)),         # W1, b1
            vmem_full((H, H)),    vmem_full((1, H)),         # W2, b2
            vmem_full((H, H)),    vmem_full((1, H)),         # W3, b3
            vmem_full((H, n_out)), vmem_full((1, n_out)),    # W_head, b_head
            smem, smem,                                      # alphas, knots
        ],
        out_specs=pl.BlockSpec((TB, n_out), lambda i: (i, 0)),
        compiler_params=pltpu.CompilerParams(
            dimension_semantics=("parallel",)),
        cost_estimate=cost,
    )(x,
      params["layer1"]["w_lp"], params["layer1"]["b"],
      params["layer2"]["w_lp"], params["layer2"]["b"],
      params["layer3"]["w_lp"], params["layer3"]["b"],
      head["w_lp"], head["b_pad"],
      alphas, params["knots"])

    return out[:B, :num_classes]


# ----------------------------------------------------------------------------
# Parameter init (deterministic, PyTorch-Linear-style uniform fan-in init).
# Stores f32 masters plus the bf16 / lane-padded copies the kernel consumes.
# ----------------------------------------------------------------------------
def init_taan_params(key, in_features, hidden_feature, task_classes,
                     basis=BASIS):
    n_tasks = len(task_classes)
    keys = jax.random.split(key, 32)
    ki = 0

    def nk():
        nonlocal ki
        k = keys[ki]
        ki += 1
        return k

    def lin_init(fan_in, fan_out):
        lim = 1.0 / (fan_in ** 0.5)
        w = jax.random.uniform(nk(), (fan_in, fan_out), jnp.float32, -lim, lim)
        b = jax.random.uniform(nk(), (1, fan_out), jnp.float32, -lim, lim)
        return w, b

    params = {}
    dims = [(in_features, hidden_feature),
            (hidden_feature, hidden_feature),
            (hidden_feature, hidden_feature)]
    alpha_layers = []
    for li, (di, do) in enumerate(dims, start=1):
        w, b = lin_init(di, do)
        alpha = (jnp.ones((n_tasks, basis), jnp.float32) / basis
                 + 0.01 * jax.random.normal(nk(), (n_tasks, basis),
                                            jnp.float32))
        alpha_layers.append(alpha)
        params[f"layer{li}"] = {"w": w, "w_lp": w.astype(jnp.bfloat16), "b": b}
    # (n_tasks, 3, basis): per-task alphas pre-stacked (no per-call stacking).
    params["alpha_stacked"] = jnp.stack(alpha_layers, axis=1)

    heads = []
    for nc in task_classes:
        w, b = lin_init(hidden_feature, nc)
        n_out = _round_up(nc, LANE)
        w_pad = jnp.zeros((hidden_feature, n_out), jnp.float32).at[:, :nc].set(w)
        b_pad = jnp.zeros((1, n_out), jnp.float32).at[:, :nc].set(b)
        heads.append({"w": w, "b": b, "num_classes": nc,
                      "w_lp": w_pad.astype(jnp.bfloat16), "b_pad": b_pad})
    params["heads"] = heads
    params["knots"] = jnp.linspace(-2.0, 2.0, basis).astype(jnp.float32)
    return params


# ----------------------------------------------------------------------------
# Pure-JAX reference (mirrors the kernel's bf16 matmul inputs / f32 accumulate
# so the correctness check is precision-matched).
# ----------------------------------------------------------------------------
def taan_forward_ref(params, feature, task_id):
    knots = params["knots"]
    alphas = params["alpha_stacked"][task_id]

    def tal(x_lp, layer, li):
        z = jnp.dot(x_lp, layer["w_lp"],
                    preferred_element_type=jnp.float32) + layer["b"]
        return sum(alphas[li, m] * jnp.maximum(z - knots[m], 0.0)
                   for m in range(BASIS))

    h = tal(feature.astype(jnp.bfloat16), params["layer1"], 0)
    h = tal(h.astype(jnp.bfloat16), params["layer2"], 1)
    h = tal(h.astype(jnp.bfloat16), params["layer3"], 2)
    head = params["heads"][task_id]
    logits = jnp.dot(h.astype(jnp.bfloat16), head["w_lp"],
                     preferred_element_type=jnp.float32) + head["b_pad"]
    return logits[:, :head["num_classes"]]


if __name__ == "__main__":
    key = jax.random.PRNGKey(0)
    k_param, k_x = jax.random.split(key)

    hidden_feature = 32
    task_classes = (5, 7)
    B = 2
    IN_FEATURES = 1152            # fixed by the module (TAL_Linear(1152, ...))

    params = init_taan_params(k_param, IN_FEATURES, hidden_feature,
                              task_classes)
    feature = jax.random.normal(k_x, (B, IN_FEATURES), jnp.float32)
    task_id = 1

    logits = taan_forward(params, feature, task_id)
    jax.block_until_ready(logits)

    assert logits.shape == (B, task_classes[task_id]), logits.shape
    ref = taan_forward_ref(params, feature, task_id)
    assert jnp.allclose(logits, ref, rtol=1e-2, atol=1e-2), (logits, ref)

    print("KERNEL_OK")
</pallas_src>

<mosaic_0001>
module attributes {stable_mosaic.version = 11 : i64} {
  func.func @_taan_fused_kernel(%arg0: i32, %arg1: memref<8x1152xbf16, #tpu.memory_space<vmem>>, %arg2: memref<1152x32xbf16, #tpu.memory_space<vmem>>, %arg3: memref<1x32xf32, #tpu.memory_space<vmem>>, %arg4: memref<32x32xbf16, #tpu.memory_space<vmem>>, %arg5: memref<1x32xf32, #tpu.memory_space<vmem>>, %arg6: memref<32x32xbf16, #tpu.memory_space<vmem>>, %arg7: memref<1x32xf32, #tpu.memory_space<vmem>>, %arg8: memref<32x128xbf16, #tpu.memory_space<vmem>>, %arg9: memref<1x128xf32, #tpu.memory_space<vmem>>, %arg10: memref<3x16xf32, #tpu.memory_space<smem>>, %arg11: memref<16xf32, #tpu.memory_space<smem>>, %arg12: memref<8x128xf32, #tpu.memory_space<vmem>>) attributes {dimension_semantics = [#tpu.dimension_semantics<parallel>], iteration_bounds = array<i64: 1>, scalar_prefetch = 0 : i64, scratch_operands = 0 : i64, tpu.core_type = #tpu.core_type<tc>, window_params = [{transform_indices = @transform_0, window_bounds = array<i64: 8, 1152>}, {pipeline_mode = #tpu.pipeline_mode<synchronous>, transform_indices = @transform_1, window_bounds = array<i64: 1152, 32>}, {pipeline_mode = #tpu.pipeline_mode<synchronous>, transform_indices = @transform_2, window_bounds = array<i64: 1, 32>}, {pipeline_mode = #tpu.pipeline_mode<synchronous>, transform_indices = @transform_3, window_bounds = array<i64: 32, 32>}, {pipeline_mode = #tpu.pipeline_mode<synchronous>, transform_indices = @transform_4, window_bounds = array<i64: 1, 32>}, {pipeline_mode = #tpu.pipeline_mode<synchronous>, transform_indices = @transform_5, window_bounds = array<i64: 32, 32>}, {pipeline_mode = #tpu.pipeline_mode<synchronous>, transform_indices = @transform_6, window_bounds = array<i64: 1, 32>}, {pipeline_mode = #tpu.pipeline_mode<synchronous>, transform_indices = @transform_7, window_bounds = array<i64: 32, 128>}, {pipeline_mode = #tpu.pipeline_mode<synchronous>, transform_indices = @transform_8, window_bounds = array<i64: 1, 128>}, {transform_indices = @transform_9, window_bounds = array<i64: 3, 16>}, {transform_indices = @transform_10, window_bounds = array<i64: 16>}, {transform_indices = @transform_11, window_bounds = array<i64: 8, 128>}]} {
    %c0 = arith.constant 0 : index
    %0 = memref.load %arg11[%c0] : memref<16xf32, #tpu.memory_space<smem>>
    %c1 = arith.constant 1 : index
    %1 = memref.load %arg11[%c1] : memref<16xf32, #tpu.memory_space<smem>>
    %c2 = arith.constant 2 : index
    %2 = memref.load %arg11[%c2] : memref<16xf32, #tpu.memory_space<smem>>
    %c3 = arith.constant 3 : index
    %3 = memref.load %arg11[%c3] : memref<16xf32, #tpu.memory_space<smem>>
    %c4 = arith.constant 4 : index
    %4 = memref.load %arg11[%c4] : memref<16xf32, #tpu.memory_space<smem>>
    %c5 = arith.constant 5 : index
    %5 = memref.load %arg11[%c5] : memref<16xf32, #tpu.memory_space<smem>>
    %c6 = arith.constant 6 : index
    %6 = memref.load %arg11[%c6] : memref<16xf32, #tpu.memory_space<smem>>
    %c7 = arith.constant 7 : index
    %7 = memref.load %arg11[%c7] : memref<16xf32, #tpu.memory_space<smem>>
    %c8 = arith.constant 8 : index
    %8 = memref.load %arg11[%c8] : memref<16xf32, #tpu.memory_space<smem>>
    %c9 = arith.constant 9 : index
    %9 = memref.load %arg11[%c9] : memref<16xf32, #tpu.memory_space<smem>>
    %c10 = arith.constant 10 : index
    %10 = memref.load %arg11[%c10] : memref<16xf32, #tpu.memory_space<smem>>
    %c11 = arith.constant 11 : index
    %11 = memref.load %arg11[%c11] : memref<16xf32, #tpu.memory_space<smem>>
    %c12 = arith.constant 12 : index
    %12 = memref.load %arg11[%c12] : memref<16xf32, #tpu.memory_space<smem>>
    %c13 = arith.constant 13 : index
    %13 = memref.load %arg11[%c13] : memref<16xf32, #tpu.memory_space<smem>>
    %c14 = arith.constant 14 : index
    %14 = memref.load %arg11[%c14] : memref<16xf32, #tpu.memory_space<smem>>
    %c15 = arith.constant 15 : index
    %15 = memref.load %arg11[%c15] : memref<16xf32, #tpu.memory_space<smem>>
    %c0_0 = arith.constant 0 : index
    %c0_1 = arith.constant 0 : index
    %16 = vector.load %arg1[%c0_0, %c0_1] : memref<8x1152xbf16, #tpu.memory_space<vmem>>, vector<8x1152xbf16>
    %c0_2 = arith.constant 0 : index
    %c0_3 = arith.constant 0 : index
    %17 = vector.load %arg2[%c0_2, %c0_3] : memref<1152x32xbf16, #tpu.memory_space<vmem>>, vector<1152x32xbf16>
    %cst = arith.constant dense<0.000000e+00> : vector<8x32xf32>
    %18 = tpu.matmul %16, %17, %cst {dimension_numbers = #tpu.dot_dimension_numbers<[1], [0], [0], [1], [0, 0, 1, 1], [], []>} : vector<8x1152xbf16>, vector<1152x32xbf16>, vector<8x32xf32> -> vector<8x32xf32>
    %c0_4 = arith.constant 0 : index
    %c0_5 = arith.constant 0 : index
    %19 = vector.load %arg3[%c0_4, %c0_5] : memref<1x32xf32, #tpu.memory_space<vmem>>, vector<1x32xf32>
    %20 = vector.broadcast %19 : vector<1x32xf32> to vector<8x32xf32>
    %21 = arith.addf %18, %20 : vector<8x32xf32>
    %c0_6 = arith.constant 0 : index
    %c0_7 = arith.constant 0 : index
    %22 = memref.load %arg10[%c0_6, %c0_7] : memref<3x16xf32, #tpu.memory_space<smem>>
    %c0_8 = arith.constant 0 : index
    %c1_9 = arith.constant 1 : index
    %23 = memref.load %arg10[%c0_8, %c1_9] : memref<3x16xf32, #tpu.memory_space<smem>>
    %c0_10 = arith.constant 0 : index
    %c2_11 = arith.constant 2 : index
    %24 = memref.load %arg10[%c0_10, %c2_11] : memref<3x16xf32, #tpu.memory_space<smem>>
    %c0_12 = arith.constant 0 : index
    %c3_13 = arith.constant 3 : index
    %25 = memref.load %arg10[%c0_12, %c3_13] : memref<3x16xf32, #tpu.memory_space<smem>>
    %c0_14 = arith.constant 0 : index
    %c4_15 = arith.constant 4 : index
    %26 = memref.load %arg10[%c0_14, %c4_15] : memref<3x16xf32, #tpu.memory_space<smem>>
    %c0_16 = arith.constant 0 : index
    %c5_17 = arith.constant 5 : index
    %27 = memref.load %arg10[%c0_16, %c5_17] : memref<3x16xf32, #tpu.memory_space<smem>>
    %c0_18 = arith.constant 0 : index
    %c6_19 = arith.constant 6 : index
    %28 = memref.load %arg10[%c0_18, %c6_19] : memref<3x16xf32, #tpu.memory_space<smem>>
    %c0_20 = arith.constant 0 : index
    %c7_21 = arith.constant 7 : index
    %29 = memref.load %arg10[%c0_20, %c7_21] : memref<3x16xf32, #tpu.memory_space<smem>>
    %c0_22 = arith.constant 0 : index
    %c8_23 = arith.constant 8 : index
    %30 = memref.load %arg10[%c0_22, %c8_23] : memref<3x16xf32, #tpu.memory_space<smem>>
    %c0_24 = arith.constant 0 : index
    %c9_25 = arith.constant 9 : index
    %31 = memref.load %arg10[%c0_24, %c9_25] : memref<3x16xf32, #tpu.memory_space<smem>>
    %c0_26 = arith.constant 0 : index
    %c10_27 = arith.constant 10 : index
    %32 = memref.load %arg10[%c0_26, %c10_27] : memref<3x16xf32, #tpu.memory_space<smem>>
    %c0_28 = arith.constant 0 : index
    %c11_29 = arith.constant 11 : index
    %33 = memref.load %arg10[%c0_28, %c11_29] : memref<3x16xf32, #tpu.memory_space<smem>>
    %c0_30 = arith.constant 0 : index
    %c12_31 = arith.constant 12 : index
    %34 = memref.load %arg10[%c0_30, %c12_31] : memref<3x16xf32, #tpu.memory_space<smem>>
    %c0_32 = arith.constant 0 : index
    %c13_33 = arith.constant 13 : index
    %35 = memref.load %arg10[%c0_32, %c13_33] : memref<3x16xf32, #tpu.memory_space<smem>>
    %c0_34 = arith.constant 0 : index
    %c14_35 = arith.constant 14 : index
    %36 = memref.load %arg10[%c0_34, %c14_35] : memref<3x16xf32, #tpu.memory_space<smem>>
    %c0_36 = arith.constant 0 : index
    %c15_37 = arith.constant 15 : index
    %37 = memref.load %arg10[%c0_36, %c15_37] : memref<3x16xf32, #tpu.memory_space<smem>>
    %38 = vector.broadcast %0 : f32 to vector<8x32xf32>
    %39 = arith.subf %21, %38 : vector<8x32xf32>
    %cst_38 = arith.constant 0.000000e+00 : f32
    %40 = vector.broadcast %cst_38 : f32 to vector<8x32xf32>
    %41 = arith.maximumf %39, %40 : vector<8x32xf32>
    %42 = vector.broadcast %22 : f32 to vector<8x32xf32>
    %43 = arith.mulf %42, %41 : vector<8x32xf32>
    %44 = vector.broadcast %1 : f32 to vector<8x32xf32>
    %45 = arith.subf %21, %44 : vector<8x32xf32>
    %cst_39 = arith.constant 0.000000e+00 : f32
    %46 = vector.broadcast %cst_39 : f32 to vector<8x32xf32>
    %47 = arith.maximumf %45, %46 : vector<8x32xf32>
    %48 = vector.broadcast %23 : f32 to vector<8x32xf32>
    %49 = arith.mulf %48, %47 : vector<8x32xf32>
    %50 = vector.broadcast %2 : f32 to vector<8x32xf32>
    %51 = arith.subf %21, %50 : vector<8x32xf32>
    %cst_40 = arith.constant 0.000000e+00 : f32
    %52 = vector.broadcast %cst_40 : f32 to vector<8x32xf32>
    %53 = arith.maximumf %51, %52 : vector<8x32xf32>
    %54 = vector.broadcast %24 : f32 to vector<8x32xf32>
    %55 = arith.mulf %54, %53 : vector<8x32xf32>
    %56 = arith.addf %43, %55 : vector<8x32xf32>
    %57 = vector.broadcast %3 : f32 to vector<8x32xf32>
    %58 = arith.subf %21, %57 : vector<8x32xf32>
    %cst_41 = arith.constant 0.000000e+00 : f32
    %59 = vector.broadcast %cst_41 : f32 to vector<8x32xf32>
    %60 = arith.maximumf %58, %59 : vector<8x32xf32>
    %61 = vector.broadcast %25 : f32 to vector<8x32xf32>
    %62 = arith.mulf %61, %60 : vector<8x32xf32>
    %63 = arith.addf %49, %62 : vector<8x32xf32>
    %64 = vector.broadcast %4 : f32 to vector<8x32xf32>
    %65 = arith.subf %21, %64 : vector<8x32xf32>
    %cst_42 = arith.constant 0.000000e+00 : f32
    %66 = vector.broadcast %cst_42 : f32 to vector<8x32xf32>
    %67 = arith.maximumf %65, %66 : vector<8x32xf32>
    %68 = vector.broadcast %26 : f32 to vector<8x32xf32>
    %69 = arith.mulf %68, %67 : vector<8x32xf32>
    %70 = arith.addf %56, %69 : vector<8x32xf32>
    %71 = vector.broadcast %5 : f32 to vector<8x32xf32>
    %72 = arith.subf %21, %71 : vector<8x32xf32>
    %cst_43 = arith.constant 0.000000e+00 : f32
    %73 = vector.broadcast %cst_43 : f32 to vector<8x32xf32>
    %74 = arith.maximumf %72, %73 : vector<8x32xf32>
    %75 = vector.broadcast %27 : f32 to vector<8x32xf32>
    %76 = arith.mulf %75, %74 : vector<8x32xf32>
    %77 = arith.addf %63, %76 : vector<8x32xf32>
    %78 = vector.broadcast %6 : f32 to vector<8x32xf32>
    %79 = arith.subf %21, %78 : vector<8x32xf32>
    %cst_44 = arith.constant 0.000000e+00 : f32
    %80 = vector.broadcast %cst_44 : f32 to vector<8x32xf32>
    %81 = arith.maximumf %79, %80 : vector<8x32xf32>
    %82 = vector.broadcast %28 : f32 to vector<8x32xf32>
    %83 = arith.mulf %82, %81 : vector<8x32xf32>
    %84 = arith.addf %70, %83 : vector<8x32xf32>
    %85 = vector.broadcast %7 : f32 to vector<8x32xf32>
    %86 = arith.subf %21, %85 : vector<8x32xf32>
    %cst_45 = arith.constant 0.000000e+00 : f32
    %87 = vector.broadcast %cst_45 : f32 to vector<8x32xf32>
    %88 = arith.maximumf %86, %87 : vector<8x32xf32>
    %89 = vector.broadcast %29 : f32 to vector<8x32xf32>
    %90 = arith.mulf %89, %88 : vector<8x32xf32>
    %91 = arith.addf %77, %90 : vector<8x32xf32>
    %92 = vector.broadcast %8 : f32 to vector<8x32xf32>
    %93 = arith.subf %21, %92 : vector<8x32xf32>
    %cst_46 = arith.constant 0.000000e+00 : f32
    %94 = vector.broadcast %cst_46 : f32 to vector<8x32xf32>
    %95 = arith.maximumf %93, %94 : vector<8x32xf32>
    %96 = vector.broadcast %30 : f32 to vector<8x32xf32>
    %97 = arith.mulf %96, %95 : vector<8x32xf32>
    %98 = arith.addf %84, %97 : vector<8x32xf32>
    %99 = vector.broadcast %9 : f32 to vector<8x32xf32>
    %100 = arith.subf %21, %99 : vector<8x32xf32>
    %cst_47 = arith.constant 0.000000e+00 : f32
    %101 = vector.broadcast %cst_47 : f32 to vector<8x32xf32>
    %102 = arith.maximumf %100, %101 : vector<8x32xf32>
    %103 = vector.broadcast %31 : f32 to vector<8x32xf32>
    %104 = arith.mulf %103, %102 : vector<8x32xf32>
    %105 = arith.addf %91, %104 : vector<8x32xf32>
    %106 = vector.broadcast %10 : f32 to vector<8x32xf32>
    %107 = arith.subf %21, %106 : vector<8x32xf32>
    %cst_48 = arith.constant 0.000000e+00 : f32
    %108 = vector.broadcast %cst_48 : f32 to vector<8x32xf32>
    %109 = arith.maximumf %107, %108 : vector<8x32xf32>
    %110 = vector.broadcast %32 : f32 to vector<8x32xf32>
    %111 = arith.mulf %110, %109 : vector<8x32xf32>
    %112 = arith.addf %98, %111 : vector<8x32xf32>
    %113 = vector.broadcast %11 : f32 to vector<8x32xf32>
    %114 = arith.subf %21, %113 : vector<8x32xf32>
    %cst_49 = arith.constant 0.000000e+00 : f32
    %115 = vector.broadcast %cst_49 : f32 to vector<8x32xf32>
    %116 = arith.maximumf %114, %115 : vector<8x32xf32>
    %117 = vector.broadcast %33 : f32 to vector<8x32xf32>
    %118 = arith.mulf %117, %116 : vector<8x32xf32>
    %119 = arith.addf %105, %118 : vector<8x32xf32>
    %120 = vector.broadcast %12 : f32 to vector<8x32xf32>
    %121 = arith.subf %21, %120 : vector<8x32xf32>
    %cst_50 = arith.constant 0.000000e+00 : f32
    %122 = vector.broadcast %cst_50 : f32 to vector<8x32xf32>
    %123 = arith.maximumf %121, %122 : vector<8x32xf32>
    %124 = vector.broadcast %34 : f32 to vector<8x32xf32>
    %125 = arith.mulf %124, %123 : vector<8x32xf32>
    %126 = arith.addf %112, %125 : vector<8x32xf32>
    %127 = vector.broadcast %13 : f32 to vector<8x32xf32>
    %128 = arith.subf %21, %127 : vector<8x32xf32>
    %cst_51 = arith.constant 0.000000e+00 : f32
    %129 = vector.broadcast %cst_51 : f32 to vector<8x32xf32>
    %130 = arith.maximumf %128, %129 : vector<8x32xf32>
    %131 = vector.broadcast %35 : f32 to vector<8x32xf32>
    %132 = arith.mulf %131, %130 : vector<8x32xf32>
    %133 = arith.addf %119, %132 : vector<8x32xf32>
    %134 = vector.broadcast %14 : f32 to vector<8x32xf32>
    %135 = arith.subf %21, %134 : vector<8x32xf32>
    %cst_52 = arith.constant 0.000000e+00 : f32
    %136 = vector.broadcast %cst_52 : f32 to vector<8x32xf32>
    %137 = arith.maximumf %135, %136 : vector<8x32xf32>
    %138 = vector.broadcast %36 : f32 to vector<8x32xf32>
    %139 = arith.mulf %138, %137 : vector<8x32xf32>
    %140 = arith.addf %126, %139 : vector<8x32xf32>
    %141 = vector.broadcast %15 : f32 to vector<8x32xf32>
    %142 = arith.subf %21, %141 : vector<8x32xf32>
    %cst_53 = arith.constant 0.000000e+00 : f32
    %143 = vector.broadcast %cst_53 : f32 to vector<8x32xf32>
    %144 = arith.maximumf %142, %143 : vector<8x32xf32>
    %145 = vector.broadcast %37 : f32 to vector<8x32xf32>
    %146 = arith.mulf %145, %144 : vector<8x32xf32>
    %147 = arith.addf %133, %146 : vector<8x32xf32>
    %148 = arith.addf %140, %147 : vector<8x32xf32>
    %149 = arith.truncf %148 : vector<8x32xf32> to vector<8x32xbf16>
    %c0_54 = arith.constant 0 : index
    %c0_55 = arith.constant 0 : index
    %150 = vector.load %arg4[%c0_54, %c0_55] : memref<32x32xbf16, #tpu.memory_space<vmem>>, vector<32x32xbf16>
    %cst_56 = arith.constant dense<0.000000e+00> : vector<8x32xf32>
    %151 = tpu.matmul %149, %150, %cst_56 {dimension_numbers = #tpu.dot_dimension_numbers<[1], [0], [0], [1], [0, 0, 1, 1], [], []>} : vector<8x32xbf16>, vector<32x32xbf16>, vector<8x32xf32> -> vector<8x32xf32>
    %c0_57 = arith.constant 0 : index
    %c0_58 = arith.constant 0 : index
    %152 = vector.load %arg5[%c0_57, %c0_58] : memref<1x32xf32, #tpu.memory_space<vmem>>, vector<1x32xf32>
    %153 = vector.broadcast %152 : vector<1x32xf32> to vector<8x32xf32>
    %154 = arith.addf %151, %153 : vector<8x32xf32>
    %c1_59 = arith.constant 1 : index
    %c0_60 = arith.constant 0 : index
    %155 = memref.load %arg10[%c1_59, %c0_60] : memref<3x16xf32, #tpu.memory_space<smem>>
    %c1_61 = arith.constant 1 : index
    %c1_62 = arith.constant 1 : index
    %156 = memref.load %arg10[%c1_61, %c1_62] : memref<3x16xf32, #tpu.memory_space<smem>>
    %c1_63 = arith.constant 1 : index
    %c2_64 = arith.constant 2 : index
    %157 = memref.load %arg10[%c1_63, %c2_64] : memref<3x16xf32, #tpu.memory_space<smem>>
    %c1_65 = arith.constant 1 : index
    %c3_66 = arith.constant 3 : index
    %158 = memref.load %arg10[%c1_65, %c3_66] : memref<3x16xf32, #tpu.memory_space<smem>>
    %c1_67 = arith.constant 1 : index
    %c4_68 = arith.constant 4 : index
    %159 = memref.load %arg10[%c1_67, %c4_68] : memref<3x16xf32, #tpu.memory_space<smem>>
    %c1_69 = arith.constant 1 : index
    %c5_70 = arith.constant 5 : index
    %160 = memref.load %arg10[%c1_69, %c5_70] : memref<3x16xf32, #tpu.memory_space<smem>>
    %c1_71 = arith.constant 1 : index
    %c6_72 = arith.constant 6 : index
    %161 = memref.load %arg10[%c1_71, %c6_72] : memref<3x16xf32, #tpu.memory_space<smem>>
    %c1_73 = arith.constant 1 : index
    %c7_74 = arith.constant 7 : index
    %162 = memref.load %arg10[%c1_73, %c7_74] : memref<3x16xf32, #tpu.memory_space<smem>>
    %c1_75 = arith.constant 1 : index
    %c8_76 = arith.constant 8 : index
    %163 = memref.load %arg10[%c1_75, %c8_76] : memref<3x16xf32, #tpu.memory_space<smem>>
    %c1_77 = arith.constant 1 : index
    %c9_78 = arith.constant 9 : index
    %164 = memref.load %arg10[%c1_77, %c9_78] : memref<3x16xf32, #tpu.memory_space<smem>>
    %c1_79 = arith.constant 1 : index
    %c10_80 = arith.constant 10 : index
    %165 = memref.load %arg10[%c1_79, %c10_80] : memref<3x16xf32, #tpu.memory_space<smem>>
    %c1_81 = arith.constant 1 : index
    %c11_82 = arith.constant 11 : index
    %166 = memref.load %arg10[%c1_81, %c11_82] : memref<3x16xf32, #tpu.memory_space<smem>>
    %c1_83 = arith.constant 1 : index
    %c12_84 = arith.constant 12 : index
    %167 = memref.load %arg10[%c1_83, %c12_84] : memref<3x16xf32, #tpu.memory_space<smem>>
    %c1_85 = arith.constant 1 : index
    %c13_86 = arith.constant 13 : index
    %168 = memref.load %arg10[%c1_85, %c13_86] : memref<3x16xf32, #tpu.memory_space<smem>>
    %c1_87 = arith.constant 1 : index
    %c14_88 = arith.constant 14 : index
    %169 = memref.load %arg10[%c1_87, %c14_88] : memref<3x16xf32, #tpu.memory_space<smem>>
    %c1_89 = arith.constant 1 : index
    %c15_90 = arith.constant 15 : index
    %170 = memref.load %arg10[%c1_89, %c15_90] : memref<3x16xf32, #tpu.memory_space<smem>>
    %171 = vector.broadcast %0 : f32 to vector<8x32xf32>
    %172 = arith.subf %154, %171 : vector<8x32xf32>
    %cst_91 = arith.constant 0.000000e+00 : f32
    %173 = vector.broadcast %cst_91 : f32 to vector<8x32xf32>
    %174 = arith.maximumf %172, %173 : vector<8x32xf32>
    %175 = vector.broadcast %155 : f32 to vector<8x32xf32>
    %176 = arith.mulf %175, %174 : vector<8x32xf32>
    %177 = vector.broadcast %1 : f32 to vector<8x32xf32>
    %178 = arith.subf %154, %177 : vector<8x32xf32>
    %cst_92 = arith.constant 0.000000e+00 : f32
    %179 = vector.broadcast %cst_92 : f32 to vector<8x32xf32>
    %180 = arith.maximumf %178, %179 : vector<8x32xf32>
    %181 = vector.broadcast %156 : f32 to vector<8x32xf32>
    %182 = arith.mulf %181, %180 : vector<8x32xf32>
    %183 = vector.broadcast %2 : f32 to vector<8x32xf32>
    %184 = arith.subf %154, %183 : vector<8x32xf32>
    %cst_93 = arith.constant 0.000000e+00 : f32
    %185 = vector.broadcast %cst_93 : f32 to vector<8x32xf32>
    %186 = arith.maximumf %184, %185 : vector<8x32xf32>
    %187 = vector.broadcast %157 : f32 to vector<8x32xf32>
    %188 = arith.mulf %187, %186 : vector<8x32xf32>
    %189 = arith.addf %176, %188 : vector<8x32xf32>
    %190 = vector.broadcast %3 : f32 to vector<8x32xf32>
    %191 = arith.subf %154, %190 : vector<8x32xf32>
    %cst_94 = arith.constant 0.000000e+00 : f32
    %192 = vector.broadcast %cst_94 : f32 to vector<8x32xf32>
    %193 = arith.maximumf %191, %192 : vector<8x32xf32>
    %194 = vector.broadcast %158 : f32 to vector<8x32xf32>
    %195 = arith.mulf %194, %193 : vector<8x32xf32>
    %196 = arith.addf %182, %195 : vector<8x32xf32>
    %197 = vector.broadcast %4 : f32 to vector<8x32xf32>
    %198 = arith.subf %154, %197 : vector<8x32xf32>
    %cst_95 = arith.constant 0.000000e+00 : f32
    %199 = vector.broadcast %cst_95 : f32 to vector<8x32xf32>
    %200 = arith.maximumf %198, %199 : vector<8x32xf32>
    %201 = vector.broadcast %159 : f32 to vector<8x32xf32>
    %202 = arith.mulf %201, %200 : vector<8x32xf32>
    %203 = arith.addf %189, %202 : vector<8x32xf32>
    %204 = vector.broadcast %5 : f32 to vector<8x32xf32>
    %205 = arith.subf %154, %204 : vector<8x32xf32>
    %cst_96 = arith.constant 0.000000e+00 : f32
    %206 = vector.broadcast %cst_96 : f32 to vector<8x32xf32>
    %207 = arith.maximumf %205, %206 : vector<8x32xf32>
    %208 = vector.broadcast %160 : f32 to vector<8x32xf32>
    %209 = arith.mulf %208, %207 : vector<8x32xf32>
    %210 = arith.addf %196, %209 : vector<8x32xf32>
    %211 = vector.broadcast %6 : f32 to vector<8x32xf32>
    %212 = arith.subf %154, %211 : vector<8x32xf32>
    %cst_97 = arith.constant 0.000000e+00 : f32
    %213 = vector.broadcast %cst_97 : f32 to vector<8x32xf32>
    %214 = arith.maximumf %212, %213 : vector<8x32xf32>
    %215 = vector.broadcast %161 : f32 to vector<8x32xf32>
    %216 = arith.mulf %215, %214 : vector<8x32xf32>
    %217 = arith.addf %203, %216 : vector<8x32xf32>
    %218 = vector.broadcast %7 : f32 to vector<8x32xf32>
    %219 = arith.subf %154, %218 : vector<8x32xf32>
    %cst_98 = arith.constant 0.000000e+00 : f32
    %220 = vector.broadcast %cst_98 : f32 to vector<8x32xf32>
    %221 = arith.maximumf %219, %220 : vector<8x32xf32>
    %222 = vector.broadcast %162 : f32 to vector<8x32xf32>
    %223 = arith.mulf %222, %221 : vector<8x32xf32>
    %224 = arith.addf %210, %223 : vector<8x32xf32>
    %225 = vector.broadcast %8 : f32 to vector<8x32xf32>
    %226 = arith.subf %154, %225 : vector<8x32xf32>
    %cst_99 = arith.constant 0.000000e+00 : f32
    %227 = vector.broadcast %cst_99 : f32 to vector<8x32xf32>
    %228 = arith.maximumf %226, %227 : vector<8x32xf32>
    %229 = vector.broadcast %163 : f32 to vector<8x32xf32>
    %230 = arith.mulf %229, %228 : vector<8x32xf32>
    %231 = arith.addf %217, %230 : vector<8x32xf32>
    %232 = vector.broadcast %9 : f32 to vector<8x32xf32>
    %233 = arith.subf %154, %232 : vector<8x32xf32>
    %cst_100 = arith.constant 0.000000e+00 : f32
    %234 = vector.broadcast %cst_100 : f32 to vector<8x32xf32>
    %235 = arith.maximumf %233, %234 : vector<8x32xf32>
    %236 = vector.broadcast %164 : f32 to vector<8x32xf32>
    %237 = arith.mulf %236, %235 : vector<8x32xf32>
    %238 = arith.addf %224, %237 : vector<8x32xf32>
    %239 = vector.broadcast %10 : f32 to vector<8x32xf32>
    %240 = arith.subf %154, %239 : vector<8x32xf32>
    %cst_101 = arith.constant 0.000000e+00 : f32
    %241 = vector.broadcast %cst_101 : f32 to vector<8x32xf32>
    %242 = arith.maximumf %240, %241 : vector<8x32xf32>
    %243 = vector.broadcast %165 : f32 to vector<8x32xf32>
    %244 = arith.mulf %243, %242 : vector<8x32xf32>
    %245 = arith.addf %231, %244 : vector<8x32xf32>
    %246 = vector.broadcast %11 : f32 to vector<8x32xf32>
    %247 = arith.subf %154, %246 : vector<8x32xf32>
    %cst_102 = arith.constant 0.000000e+00 : f32
    %248 = vector.broadcast %cst_102 : f32 to vector<8x32xf32>
    %249 = arith.maximumf %247, %248 : vector<8x32xf32>
    %250 = vector.broadcast %166 : f32 to vector<8x32xf32>
    %251 = arith.mulf %250, %249 : vector<8x32xf32>
    %252 = arith.addf %238, %251 : vector<8x32xf32>
    %253 = vector.broadcast %12 : f32 to vector<8x32xf32>
    %254 = arith.subf %154, %253 : vector<8x32xf32>
    %cst_103 = arith.constant 0.000000e+00 : f32
    %255 = vector.broadcast %cst_103 : f32 to vector<8x32xf32>
    %256 = arith.maximumf %254, %255 : vector<8x32xf32>
    %257 = vector.broadcast %167 : f32 to vector<8x32xf32>
    %258 = arith.mulf %257, %256 : vector<8x32xf32>
    %259 = arith.addf %245, %258 : vector<8x32xf32>
    %260 = vector.broadcast %13 : f32 to vector<8x32xf32>
    %261 = arith.subf %154, %260 : vector<8x32xf32>
    %cst_104 = arith.constant 0.000000e+00 : f32
    %262 = vector.broadcast %cst_104 : f32 to vector<8x32xf32>
    %263 = arith.maximumf %261, %262 : vector<8x32xf32>
    %264 = vector.broadcast %168 : f32 to vector<8x32xf32>
    %265 = arith.mulf %264, %263 : vector<8x32xf32>
    %266 = arith.addf %252, %265 : vector<8x32xf32>
    %267 = vector.broadcast %14 : f32 to vector<8x32xf32>
    %268 = arith.subf %154, %267 : vector<8x32xf32>
    %cst_105 = arith.constant 0.000000e+00 : f32
    %269 = vector.broadcast %cst_105 : f32 to vector<8x32xf32>
    %270 = arith.maximumf %268, %269 : vector<8x32xf32>
    %271 = vector.broadcast %169 : f32 to vector<8x32xf32>
    %272 = arith.mulf %271, %270 : vector<8x32xf32>
    %273 = arith.addf %259, %272 : vector<8x32xf32>
    %274 = vector.broadcast %15 : f32 to vector<8x32xf32>
    %275 = arith.subf %154, %274 : vector<8x32xf32>
    %cst_106 = arith.constant 0.000000e+00 : f32
    %276 = vector.broadcast %cst_106 : f32 to vector<8x32xf32>
    %277 = arith.maximumf %275, %276 : vector<8x32xf32>
    %278 = vector.broadcast %170 : f32 to vector<8x32xf32>
    %279 = arith.mulf %278, %277 : vector<8x32xf32>
    %280 = arith.addf %266, %279 : vector<8x32xf32>
    %281 = arith.addf %273, %280 : vector<8x32xf32>
    %282 = arith.truncf %281 : vector<8x32xf32> to vector<8x32xbf16>
    %c0_107 = arith.constant 0 : index
    %c0_108 = arith.constant 0 : index
    %283 = vector.load %arg6[%c0_107, %c0_108] : memref<32x32xbf16, #tpu.memory_space<vmem>>, vector<32x32xbf16>
    %cst_109 = arith.constant dense<0.000000e+00> : vector<8x32xf32>
    %284 = tpu.matmul %282, %283, %cst_109 {dimension_numbers = #tpu.dot_dimension_numbers<[1], [0], [0], [1], [0, 0, 1, 1], [], []>} : vector<8x32xbf16>, vector<32x32xbf16>, vector<8x32xf32> -> vector<8x32xf32>
    %c0_110 = arith.constant 0 : index
    %c0_111 = arith.constant 0 : index
    %285 = vector.load %arg7[%c0_110, %c0_111] : memref<1x32xf32, #tpu.memory_space<vmem>>, vector<1x32xf32>
    %286 = vector.broadcast %285 : vector<1x32xf32> to vector<8x32xf32>
    %287 = arith.addf %284, %286 : vector<8x32xf32>
    %c2_112 = arith.constant 2 : index
    %c0_113 = arith.constant 0 : index
    %288 = memref.load %arg10[%c2_112, %c0_113] : memref<3x16xf32, #tpu.memory_space<smem>>
    %c2_114 = arith.constant 2 : index
    %c1_115 = arith.constant 1 : index
    %289 = memref.load %arg10[%c2_114, %c1_115] : memref<3x16xf32, #tpu.memory_space<smem>>
    %c2_116 = arith.constant 2 : index
    %c2_117 = arith.constant 2 : index
    %290 = memref.load %arg10[%c2_116, %c2_117] : memref<3x16xf32, #tpu.memory_space<smem>>
    %c2_118 = arith.constant 2 : index
    %c3_119 = arith.constant 3 : index
    %291 = memref.load %arg10[%c2_118, %c3_119] : memref<3x16xf32, #tpu.memory_space<smem>>
    %c2_120 = arith.constant 2 : index
    %c4_121 = arith.constant 4 : index
    %292 = memref.load %arg10[%c2_120, %c4_121] : memref<3x16xf32, #tpu.memory_space<smem>>
    %c2_122 = arith.constant 2 : index
    %c5_123 = arith.constant 5 : index
    %293 = memref.load %arg10[%c2_122, %c5_123] : memref<3x16xf32, #tpu.memory_space<smem>>
    %c2_124 = arith.constant 2 : index
    %c6_125 = arith.constant 6 : index
    %294 = memref.load %arg10[%c2_124, %c6_125] : memref<3x16xf32, #tpu.memory_space<smem>>
    %c2_126 = arith.constant 2 : index
    %c7_127 = arith.constant 7 : index
    %295 = memref.load %arg10[%c2_126, %c7_127] : memref<3x16xf32, #tpu.memory_space<smem>>
    %c2_128 = arith.constant 2 : index
    %c8_129 = arith.constant 8 : index
    %296 = memref.load %arg10[%c2_128, %c8_129] : memref<3x16xf32, #tpu.memory_space<smem>>
    %c2_130 = arith.constant 2 : index
    %c9_131 = arith.constant 9 : index
    %297 = memref.load %arg10[%c2_130, %c9_131] : memref<3x16xf32, #tpu.memory_space<smem>>
    %c2_132 = arith.constant 2 : index
    %c10_133 = arith.constant 10 : index
    %298 = memref.load %arg10[%c2_132, %c10_133] : memref<3x16xf32, #tpu.memory_space<smem>>
    %c2_134 = arith.constant 2 : index
    %c11_135 = arith.constant 11 : index
    %299 = memref.load %arg10[%c2_134, %c11_135] : memref<3x16xf32, #tpu.memory_space<smem>>
    %c2_136 = arith.constant 2 : index
    %c12_137 = arith.constant 12 : index
    %300 = memref.load %arg10[%c2_136, %c12_137] : memref<3x16xf32, #tpu.memory_space<smem>>
    %c2_138 = arith.constant 2 : index
    %c13_139 = arith.constant 13 : index
    %301 = memref.load %arg10[%c2_138, %c13_139] : memref<3x16xf32, #tpu.memory_space<smem>>
    %c2_140 = arith.constant 2 : index
    %c14_141 = arith.constant 14 : index
    %302 = memref.load %arg10[%c2_140, %c14_141] : memref<3x16xf32, #tpu.memory_space<smem>>
    %c2_142 = arith.constant 2 : index
    %c15_143 = arith.constant 15 : index
    %303 = memref.load %arg10[%c2_142, %c15_143] : memref<3x16xf32, #tpu.memory_space<smem>>
    %304 = vector.broadcast %0 : f32 to vector<8x32xf32>
    %305 = arith.subf %287, %304 : vector<8x32xf32>
    %cst_144 = arith.constant 0.000000e+00 : f32
    %306 = vector.broadcast %cst_144 : f32 to vector<8x32xf32>
    %307 = arith.maximumf %305, %306 : vector<8x32xf32>
    %308 = vector.broadcast %288 : f32 to vector<8x32xf32>
    %309 = arith.mulf %308, %307 : vector<8x32xf32>
    %310 = vector.broadcast %1 : f32 to vector<8x32xf32>
    %311 = arith.subf %287, %310 : vector<8x32xf32>
    %cst_145 = arith.constant 0.000000e+00 : f32
    %312 = vector.broadcast %cst_145 : f32 to vector<8x32xf32>
    %313 = arith.maximumf %311, %312 : vector<8x32xf32>
    %314 = vector.broadcast %289 : f32 to vector<8x32xf32>
    %315 = arith.mulf %314, %313 : vector<8x32xf32>
    %316 = vector.broadcast %2 : f32 to vector<8x32xf32>
    %317 = arith.subf %287, %316 : vector<8x32xf32>
    %cst_146 = arith.constant 0.000000e+00 : f32
    %318 = vector.broadcast %cst_146 : f32 to vector<8x32xf32>
    %319 = arith.maximumf %317, %318 : vector<8x32xf32>
    %320 = vector.broadcast %290 : f32 to vector<8x32xf32>
    %321 = arith.mulf %320, %319 : vector<8x32xf32>
    %322 = arith.addf %309, %321 : vector<8x32xf32>
    %323 = vector.broadcast %3 : f32 to vector<8x32xf32>
    %324 = arith.subf %287, %323 : vector<8x32xf32>
    %cst_147 = arith.constant 0.000000e+00 : f32
    %325 = vector.broadcast %cst_147 : f32 to vector<8x32xf32>
    %326 = arith.maximumf %324, %325 : vector<8x32xf32>
    %327 = vector.broadcast %291 : f32 to vector<8x32xf32>
    %328 = arith.mulf %327, %326 : vector<8x32xf32>
    %329 = arith.addf %315, %328 : vector<8x32xf32>
    %330 = vector.broadcast %4 : f32 to vector<8x32xf32>
    %331 = arith.subf %287, %330 : vector<8x32xf32>
    %cst_148 = arith.constant 0.000000e+00 : f32
    %332 = vector.broadcast %cst_148 : f32 to vector<8x32xf32>
    %333 = arith.maximumf %331, %332 : vector<8x32xf32>
    %334 = vector.broadcast %292 : f32 to vector<8x32xf32>
    %335 = arith.mulf %334, %333 : vector<8x32xf32>
    %336 = arith.addf %322, %335 : vector<8x32xf32>
    %337 = vector.broadcast %5 : f32 to vector<8x32xf32>
    %338 = arith.subf %287, %337 : vector<8x32xf32>
    %cst_149 = arith.constant 0.000000e+00 : f32
    %339 = vector.broadcast %cst_149 : f32 to vector<8x32xf32>
    %340 = arith.maximumf %338, %339 : vector<8x32xf32>
    %341 = vector.broadcast %293 : f32 to vector<8x32xf32>
    %342 = arith.mulf %341, %340 : vector<8x32xf32>
    %343 = arith.addf %329, %342 : vector<8x32xf32>
    %344 = vector.broadcast %6 : f32 to vector<8x32xf32>
    %345 = arith.subf %287, %344 : vector<8x32xf32>
    %cst_150 = arith.constant 0.000000e+00 : f32
    %346 = vector.broadcast %cst_150 : f32 to vector<8x32xf32>
    %347 = arith.maximumf %345, %346 : vector<8x32xf32>
    %348 = vector.broadcast %294 : f32 to vector<8x32xf32>
    %349 = arith.mulf %348, %347 : vector<8x32xf32>
    %350 = arith.addf %336, %349 : vector<8x32xf32>
    %351 = vector.broadcast %7 : f32 to vector<8x32xf32>
    %352 = arith.subf %287, %351 : vector<8x32xf32>
    %cst_151 = arith.constant 0.000000e+00 : f32
    %353 = vector.broadcast %cst_151 : f32 to vector<8x32xf32>
    %354 = arith.maximumf %352, %353 : vector<8x32xf32>
    %355 = vector.broadcast %295 : f32 to vector<8x32xf32>
    %356 = arith.mulf %355, %354 : vector<8x32xf32>
    %357 = arith.addf %343, %356 : vector<8x32xf32>
    %358 = vector.broadcast %8 : f32 to vector<8x32xf32>
    %359 = arith.subf %287, %358 : vector<8x32xf32>
    %cst_152 = arith.constant 0.000000e+00 : f32
    %360 = vector.broadcast %cst_152 : f32 to vector<8x32xf32>
    %361 = arith.maximumf %359, %360 : vector<8x32xf32>
    %362 = vector.broadcast %296 : f32 to vector<8x32xf32>
    %363 = arith.mulf %362, %361 : vector<8x32xf32>
    %364 = arith.addf %350, %363 : vector<8x32xf32>
    %365 = vector.broadcast %9 : f32 to vector<8x32xf32>
    %366 = arith.subf %287, %365 : vector<8x32xf32>
    %cst_153 = arith.constant 0.000000e+00 : f32
    %367 = vector.broadcast %cst_153 : f32 to vector<8x32xf32>
    %368 = arith.maximumf %366, %367 : vector<8x32xf32>
    %369 = vector.broadcast %297 : f32 to vector<8x32xf32>
    %370 = arith.mulf %369, %368 : vector<8x32xf32>
    %371 = arith.addf %357, %370 : vector<8x32xf32>
    %372 = vector.broadcast %10 : f32 to vector<8x32xf32>
    %373 = arith.subf %287, %372 : vector<8x32xf32>
    %cst_154 = arith.constant 0.000000e+00 : f32
    %374 = vector.broadcast %cst_154 : f32 to vector<8x32xf32>
    %375 = arith.maximumf %373, %374 : vector<8x32xf32>
    %376 = vector.broadcast %298 : f32 to vector<8x32xf32>
    %377 = arith.mulf %376, %375 : vector<8x32xf32>
    %378 = arith.addf %364, %377 : vector<8x32xf32>
    %379 = vector.broadcast %11 : f32 to vector<8x32xf32>
    %380 = arith.subf %287, %379 : vector<8x32xf32>
    %cst_155 = arith.constant 0.000000e+00 : f32
    %381 = vector.broadcast %cst_155 : f32 to vector<8x32xf32>
    %382 = arith.maximumf %380, %381 : vector<8x32xf32>
    %383 = vector.broadcast %299 : f32 to vector<8x32xf32>
    %384 = arith.mulf %383, %382 : vector<8x32xf32>
    %385 = arith.addf %371, %384 : vector<8x32xf32>
    %386 = vector.broadcast %12 : f32 to vector<8x32xf32>
    %387 = arith.subf %287, %386 : vector<8x32xf32>
    %cst_156 = arith.constant 0.000000e+00 : f32
    %388 = vector.broadcast %cst_156 : f32 to vector<8x32xf32>
    %389 = arith.maximumf %387, %388 : vector<8x32xf32>
    %390 = vector.broadcast %300 : f32 to vector<8x32xf32>
    %391 = arith.mulf %390, %389 : vector<8x32xf32>
    %392 = arith.addf %378, %391 : vector<8x32xf32>
    %393 = vector.broadcast %13 : f32 to vector<8x32xf32>
    %394 = arith.subf %287, %393 : vector<8x32xf32>
    %cst_157 = arith.constant 0.000000e+00 : f32
    %395 = vector.broadcast %cst_157 : f32 to vector<8x32xf32>
    %396 = arith.maximumf %394, %395 : vector<8x32xf32>
    %397 = vector.broadcast %301 : f32 to vector<8x32xf32>
    %398 = arith.mulf %397, %396 : vector<8x32xf32>
    %399 = arith.addf %385, %398 : vector<8x32xf32>
    %400 = vector.broadcast %14 : f32 to vector<8x32xf32>
    %401 = arith.subf %287, %400 : vector<8x32xf32>
    %cst_158 = arith.constant 0.000000e+00 : f32
    %402 = vector.broadcast %cst_158 : f32 to vector<8x32xf32>
    %403 = arith.maximumf %401, %402 : vector<8x32xf32>
    %404 = vector.broadcast %302 : f32 to vector<8x32xf32>
    %405 = arith.mulf %404, %403 : vector<8x32xf32>
    %406 = arith.addf %392, %405 : vector<8x32xf32>
    %407 = vector.broadcast %15 : f32 to vector<8x32xf32>
    %408 = arith.subf %287, %407 : vector<8x32xf32>
    %cst_159 = arith.constant 0.000000e+00 : f32
    %409 = vector.broadcast %cst_159 : f32 to vector<8x32xf32>
    %410 = arith.maximumf %408, %409 : vector<8x32xf32>
    %411 = vector.broadcast %303 : f32 to vector<8x32xf32>
    %412 = arith.mulf %411, %410 : vector<8x32xf32>
    %413 = arith.addf %399, %412 : vector<8x32xf32>
    %414 = arith.addf %406, %413 : vector<8x32xf32>
    %415 = arith.truncf %414 : vector<8x32xf32> to vector<8x32xbf16>
    %c0_160 = arith.constant 0 : index
    %c0_161 = arith.constant 0 : index
    %416 = vector.load %arg8[%c0_160, %c0_161] : memref<32x128xbf16, #tpu.memory_space<vmem>>, vector<32x128xbf16>
    %cst_162 = arith.constant dense<0.000000e+00> : vector<8x128xf32>
    %417 = tpu.matmul %415, %416, %cst_162 {dimension_numbers = #tpu.dot_dimension_numbers<[1], [0], [0], [1], [0, 0, 1, 1], [], []>} : vector<8x32xbf16>, vector<32x128xbf16>, vector<8x128xf32> -> vector<8x128xf32>
    %c0_163 = arith.constant 0 : index
    %c0_164 = arith.constant 0 : index
    %418 = vector.load %arg9[%c0_163, %c0_164] : memref<1x128xf32, #tpu.memory_space<vmem>>, vector<1x128xf32>
    %419 = vector.broadcast %418 : vector<1x128xf32> to vector<8x128xf32>
    %420 = arith.addf %417, %419 : vector<8x128xf32>
    %c0_165 = arith.constant 0 : index
    %c0_166 = arith.constant 0 : index
    %421 = vector.load %arg12[%c0_165, %c0_166] : memref<8x128xf32, #tpu.memory_space<vmem>>, vector<8x128xf32>
    tpu.vector_store %arg12[%c0_165, %c0_166], %420 {strides = array<i32>} : memref<8x128xf32, #tpu.memory_space<vmem>>, vector<8x128xf32>,
    return
  }
  func.func @transform_0(%arg0: i32) -> (i32, i32) {
    %c0_i32 = arith.constant 0 : i32
    %c0_i32_0 = arith.constant 0 : i32
    return %arg0, %c0_i32 : i32, i32
  }
  func.func @transform_1(%arg0: i32) -> (i32, i32) {
    %c0_i32 = arith.constant 0 : i32
    %c0_i32_0 = arith.constant 0 : i32
    %c0_i32_1 = arith.constant 0 : i32
    return %c0_i32, %c0_i32_0 : i32, i32
  }
  func.func @transform_2(%arg0: i32) -> (i32, i32) {
    %c0_i32 = arith.constant 0 : i32
    %c0_i32_0 = arith.constant 0 : i32
    %c0_i32_1 = arith.constant 0 : i32
    return %c0_i32, %c0_i32_0 : i32, i32
  }
  func.func @transform_3(%arg0: i32) -> (i32, i32) {
    %c0_i32 = arith.constant 0 : i32
    %c0_i32_0 = arith.constant 0 : i32
    %c0_i32_1 = arith.constant 0 : i32
    return %c0_i32, %c0_i32_0 : i32, i32
  }
  func.func @transform_4(%arg0: i32) -> (i32, i32) {
    %c0_i32 = arith.constant 0 : i32
    %c0_i32_0 = arith.constant 0 : i32
    %c0_i32_1 = arith.constant 0 : i32
    return %c0_i32, %c0_i32_0 : i32, i32
  }
  func.func @transform_5(%arg0: i32) -> (i32, i32) {
    %c0_i32 = arith.constant 0 : i32
    %c0_i32_0 = arith.constant 0 : i32
    %c0_i32_1 = arith.constant 0 : i32
    return %c0_i32, %c0_i32_0 : i32, i32
  }
  func.func @transform_6(%arg0: i32) -> (i32, i32) {
    %c0_i32 = arith.constant 0 : i32
    %c0_i32_0 = arith.constant 0 : i32
    %c0_i32_1 = arith.constant 0 : i32
    return %c0_i32, %c0_i32_0 : i32, i32
  }
  func.func @transform_7(%arg0: i32) -> (i32, i32) {
    %c0_i32 = arith.constant 0 : i32
    %c0_i32_0 = arith.constant 0 : i32
    %c0_i32_1 = arith.constant 0 : i32
    return %c0_i32, %c0_i32_0 : i32, i32
  }
  func.func @transform_8(%arg0: i32) -> (i32, i32) {
    %c0_i32 = arith.constant 0 : i32
    %c0_i32_0 = arith.constant 0 : i32
    %c0_i32_1 = arith.constant 0 : i32
    return %c0_i32, %c0_i32_0 : i32, i32
  }
  func.func @transform_9(%arg0: i32) -> (i32, i32) {
    %c0_i32 = arith.constant 0 : i32
    %c0_i32_0 = arith.constant 0 : i32
    %c0_i32_1 = arith.constant 0 : i32
    return %c0_i32, %c0_i32_0 : i32, i32
  }
  func.func @transform_10(%arg0: i32) -> i32 {
    %c0_i32 = arith.constant 0 : i32
    %c0_i32_0 = arith.constant 0 : i32
    return %c0_i32 : i32
  }
  func.func @transform_11(%arg0: i32) -> (i32, i32) {
    %c0_i32 = arith.constant 0 : i32
    %c0_i32_0 = arith.constant 0 : i32
    return %arg0, %c0_i32 : i32, i32
  }
}

</mosaic_0001>

<llo_original>
// kernel: tpu_custom_call.1
$region0: #{tpu_custom_call.1}
  #allocation0 [shape = 'u32[]', space=smem, size = 0x4, offset = 0x4, fixed_abs, tag = 'smem constant byte address 0x4 - core index']
  #allocation1 [shape = 'u32[144,128]{1,0:T(1,128)}', space=vmem, size = 0x12000, scoped, tag = 'internal scratch']
  %s0 = inlined_call_operand.vmem [shape: bf16[8,1152], index: 0, kind: input, shape index: {}]
  %s1 = inlined_call_operand.vmem [shape: bf16[1152,32], index: 1, kind: input, shape index: {}]
  %s2 = inlined_call_operand.vmem [shape: f32[1,32], index: 2, kind: input, shape index: {}]
  %s3 = inlined_call_operand.vmem [shape: bf16[32,32], index: 3, kind: input, shape index: {}]
  %s4 = inlined_call_operand.vmem [shape: f32[1,32], index: 4, kind: input, shape index: {}]
  %s5 = inlined_call_operand.vmem [shape: bf16[32,32], index: 5, kind: input, shape index: {}]
  %s6 = inlined_call_operand.vmem [shape: f32[1,32], index: 6, kind: input, shape index: {}]
  %s7 = inlined_call_operand.vmem [shape: bf16[32,128], index: 7, kind: input, shape index: {}]
  %s8 = inlined_call_operand.vmem [shape: f32[1,128], index: 8, kind: input, shape index: {}]
  %s9 = inlined_call_operand.vmem [shape: f32[3,16], index: 9, kind: input, shape index: {}]
  %s10 = inlined_call_operand.vmem [shape: f32[16], index: 10, kind: input, shape index: {}]
  %s11 = inlined_call_operand.hbm [shape: f32[8,128], index: 11, kind: output, shape index: {}]
  %s12 = sld [smem:[#allocation0]]
  $region62: #{tpu_custom_call.1} parent=0
    _
  %s14 = ssub.s32 1, %s12
  %s15 = scalar_select 0, %s14, %s12
  $region1: #{tpu_custom_call.1} parent=0
    #allocation2 [shape = 'u8[2048]{0}', space=smem, size = 0x800, scoped, tag = 'input window, operand 9, single buffered']
    #allocation3 [shape = 's32[1]{0}', space=sflag, size = 0x4, scoped, tag = 'scoped memory for tpu_custom_call.1']
    #allocation4 [shape = 's32[1]{0}', space=sflag, size = 0x4, scoped, tag = 'scoped memory for tpu_custom_call.1']
    #allocation5 [shape = 'u8[512]{0}', space=smem, size = 0x200, scoped, tag = 'input window, operand 10, single buffered']
    #allocation6 [shape = 's32[1]{0}', space=sflag, size = 0x4, scoped, tag = 'scoped memory for tpu_custom_call.1']
    #allocation7 [shape = 'u8[4096]{0}', space=vmem, size = 0x1000, scoped, tag = 'output window, operand 0, single buffered']
    %16 = vsyncpa [#allocation4], 0
    %17 = vsyncpa [#allocation6], 0
    %18 = vsyncpa [#allocation3], 0
    // Predicated region
    $region2: #{tpu_custom_call.1} parent=1 // pred_check
      _
    $region3: #{tpu_custom_call.1} parent=1 // pred_check_branch
      %20 = sbr.rel (0) target = $region5
    $region4: #{tpu_custom_call.1} parent=1 // pred_region
      _
    $region5: #{tpu_custom_call.1} parent=1 // pred_fallthru
      _
    // Predicated region
    $region6: #{tpu_custom_call.1} parent=1 // pred_check
      _
    $region7: #{tpu_custom_call.1} parent=1 // pred_check_branch
      %22 = sbr.rel (0) target = $region9
    $region8: #{tpu_custom_call.1} parent=1 // pred_region
      _
    $region9: #{tpu_custom_call.1} parent=1 // pred_fallthru
      _
    // Predicated region
    $region10: #{tpu_custom_call.1} parent=1 // pred_check
      _
    $region11: #{tpu_custom_call.1} parent=1 // pred_check_branch
      %24 = sbr.rel (0) target = $region13
    $region12: #{tpu_custom_call.1} parent=1 // pred_region
      _
    $region13: #{tpu_custom_call.1} parent=1 // pred_fallthru
      _
    // Predicated region
    $region14: #{tpu_custom_call.1} parent=1 // pred_check
      _
    $region15: #{tpu_custom_call.1} parent=1 // pred_check_branch
      %26 = sbr.rel (0) target = $region17
    $region16: #{tpu_custom_call.1} parent=1 // pred_region
      _
    $region17: #{tpu_custom_call.1} parent=1 // pred_fallthru
      _
    // Predicated region
    $region18: #{tpu_custom_call.1} parent=1 // pred_check
      _
    $region19: #{tpu_custom_call.1} parent=1 // pred_check_branch
      %28 = sbr.rel (0) target = $region21
    $region20: #{tpu_custom_call.1} parent=1 // pred_region
      _
    $region21: #{tpu_custom_call.1} parent=1 // pred_fallthru
      _
    // Predicated region
    $region22: #{tpu_custom_call.1} parent=1 // pred_check
      _
    $region23: #{tpu_custom_call.1} parent=1 // pred_check_branch
      %30 = sbr.rel (0) target = $region25
    $region24: #{tpu_custom_call.1} parent=1 // pred_region
      _
    $region25: #{tpu_custom_call.1} parent=1 // pred_fallthru
      _
    // Predicated region
    $region26: #{tpu_custom_call.1} parent=1 // pred_check
      _
    $region27: #{tpu_custom_call.1} parent=1 // pred_check_branch
      %32 = sbr.rel (0) target = $region29
    $region28: #{tpu_custom_call.1} parent=1 // pred_region
      _
    $region29: #{tpu_custom_call.1} parent=1 // pred_fallthru
      _
    // Predicated region
    $region30: #{tpu_custom_call.1} parent=1 // pred_check
      _
    $region31: #{tpu_custom_call.1} parent=1 // pred_check_branch
      %34 = sbr.rel (0) target = $region33
    $region32: #{tpu_custom_call.1} parent=1 // pred_region
      _
    $region33: #{tpu_custom_call.1} parent=1 // pred_fallthru
      _
    // Predicated region
    $region34: #{tpu_custom_call.1} parent=1 // pred_check
      _
    $region35: #{tpu_custom_call.1} parent=1 // pred_check_branch
      %36 = sbr.rel (0) target = $region37
    $region36: #{tpu_custom_call.1} parent=1 // pred_region
      _
    $region37: #{tpu_custom_call.1} parent=1 // pred_fallthru
      _
    // Predicated region
    $region38: #{tpu_custom_call.1} parent=1 // pred_check
      _
    $region39: #{tpu_custom_call.1} parent=1 // pred_check_branch
      %38 = sbr.rel (0) target = $region41
    $region40: #{tpu_custom_call.1} parent=1 // pred_region
      %s40 = ssub.s32 64, 64
      %41 = vsyncadd [#allocation4], %s40
      %s43 = sshll.u32 %s9, 4
      %s44 = int_to_ptr.vmem [resolvable:$true] %s43
      %46 = dma.vmem_to_smem %s44, 64, [#allocation2], [#allocation4]
    $region41: #{tpu_custom_call.1} parent=1 // pred_fallthru
      _
    // Predicated region
    $region42: #{tpu_custom_call.1} parent=1 // pred_check
      _
    $region43: #{tpu_custom_call.1} parent=1 // pred_check_branch
      %48 = sbr.rel (0) target = $region45
    $region44: #{tpu_custom_call.1} parent=1 // pred_region
      %s50 = ssub.s32 16, 16
      %51 = vsyncadd [#allocation6], %s50
      %s53 = sshll.u32 %s10, 4
      %s54 = int_to_ptr.vmem [resolvable:$true] %s53
      %56 = dma.vmem_to_smem %s54, 16, [#allocation5], [#allocation6]
    $region45: #{tpu_custom_call.1} parent=1 // pred_fallthru
      _
    // Predicated region
    $region46: #{tpu_custom_call.1} parent=1 // pred_check
      _
    $region47: #{tpu_custom_call.1} parent=1 // pred_check_branch
      %58 = sbr.rel (0) target = $region49
    $region48: #{tpu_custom_call.1} parent=1 // pred_region
      %59 = dma.done [#allocation4], 64
    $region49: #{tpu_custom_call.1} parent=1 // pred_fallthru
      _
    // Predicated region
    $region50: #{tpu_custom_call.1} parent=1 // pred_check
      _
    $region51: #{tpu_custom_call.1} parent=1 // pred_check_branch
      %61 = sbr.rel (0) target = $region53
    $region52: #{tpu_custom_call.1} parent=1 // pred_region
      %62 = dma.done [#allocation6], 16
    $region53: #{tpu_custom_call.1} parent=1 // pred_fallthru
      _
    %63 = sfence
    %s65 = sld [smem:[#allocation5]]
    %s66 = sld [smem:[#allocation5 + $0x1]]
    %s67 = sld [smem:[#allocation5 + $0x2]]
    %s68 = sld [smem:[#allocation5 + $0x3]]
    %s69 = sld [smem:[#allocation5 + $0x4]]
    %s70 = sld [smem:[#allocation5 + $0x5]]
    %s71 = sld [smem:[#allocation5 + $0x6]]
    %s72 = sld [smem:[#allocation5 + $0x7]]
    %s73 = sld [smem:[#allocation5 + $0x8]]
    %s74 = sld [smem:[#allocation5 + $0x9]]
    %s75 = sld [smem:[#allocation5 + $0xa]]
    %s76 = sld [smem:[#allocation5 + $0xb]]
    %s77 = sld [smem:[#allocation5 + $0xc]]
    %s78 = sld [smem:[#allocation5 + $0xd]]
    %s79 = sld [smem:[#allocation5 + $0xe]]
    %s80 = sld [smem:[#allocation5 + $0xf]]
    %v81 = vld [vmem:[%s0] sm:$0xff]
    %v82 = vld [vmem:[%s0 + $0x8] sm:$0xff]
    %v83 = vld [vmem:[%s0 + $0x10] sm:$0xff]
    %v84 = vld [vmem:[%s0 + $0x18] sm:$0xff]
    %v85 = vld [vmem:[%s0 + $0x20] sm:$0xf]
    %v86 = vld [vmem:[%s1] sm:$0xf]
    %v87 = vld [vmem:[%s1 + $0x4] sm:$0xf]
    %v88 = vld [vmem:[%s1 + $0x8] sm:$0xf]
    %v89 = vld [vmem:[%s1 + $0xc] sm:$0xf]
    %v90 = vld [vmem:[%s1 + $0x10] sm:$0xf]
    %v91 = vld [vmem:[%s1 + $0x14] sm:$0xf]
    %v92 = vld [vmem:[%s1 + $0x18] sm:$0xf]
    %v93 = vld [vmem:[%s1 + $0x1c] sm:$0xf]
    %v94 = vld [vmem:[%s1 + $0x20] sm:$0xf]
    %v95 = vld [vmem:[%s1 + $0x24] sm:$0xf]
    %v96 = vld [vmem:[%s1 + $0x28] sm:$0xf]
    %v97 = vld [vmem:[%s1 + $0x2c] sm:$0xf]
    %v98 = vld [vmem:[%s1 + $0x30] sm:$0xf]
    %v99 = vld [vmem:[%s1 + $0x34] sm:$0xf]
    %v100 = vld [vmem:[%s1 + $0x38] sm:$0xf]
    %v101 = vld [vmem:[%s1 + $0x3c] sm:$0xf]
    %v102 = vld [vmem:[%s1 + $0x40] sm:$0xf]
    %v103 = vld [vmem:[%s1 + $0x44] sm:$0xf]
    %v104 = vld [vmem:[%s1 + $0x48] sm:$0xf]
    %v105 = vld [vmem:[%s1 + $0x4c] sm:$0xf]
    %v106 = vld [vmem:[%s1 + $0x50] sm:$0xf]
    %v107 = vld [vmem:[%s1 + $0x54] sm:$0xf]
    %v108 = vld [vmem:[%s1 + $0x58] sm:$0xf]
    %v109 = vld [vmem:[%s1 + $0x5c] sm:$0xf]
    %v110 = vld [vmem:[%s1 + $0x60] sm:$0xf]
    %v111 = vld [vmem:[%s1 + $0x64] sm:$0xf]
    %v112 = vld [vmem:[%s1 + $0x68] sm:$0xf]
    %v113 = vld [vmem:[%s1 + $0x6c] sm:$0xf]
    %v114 = vld [vmem:[%s1 + $0x70] sm:$0xf]
    %v115 = vld [vmem:[%s1 + $0x74] sm:$0xf]
    %v116 = vld [vmem:[%s1 + $0x78] sm:$0xf]
    %v117 = vld [vmem:[%s1 + $0x7c] sm:$0xf]
    %v118 = vld [vmem:[%s1 + $0x80] sm:$0xf]
    %v119 = vld [vmem:[%s1 + $0x84] sm:$0xf]
    %v120 = vld [vmem:[%s1 + $0x88] sm:$0xf]
    %v121 = vld [vmem:[%s1 + $0x8c] sm:$0xf]
    %v122 = vld [vmem:[%s1 + $0x90] sm:$0xf]
    %v123 = vld [vmem:[%s1 + $0x94] sm:$0xf]
    %v124 = vld [vmem:[%s1 + $0x98] sm:$0xf]
    %v125 = vld [vmem:[%s1 + $0x9c] sm:$0xf]
    %v126 = vld [vmem:[%s1 + $0xa0] sm:$0xf]
    %v127 = vld [vmem:[%s1 + $0xa4] sm:$0xf]
    %v128 = vld [vmem:[%s1 + $0xa8] sm:$0xf]
    %v129 = vld [vmem:[%s1 + $0xac] sm:$0xf]
    %v130 = vld [vmem:[%s1 + $0xb0] sm:$0xf]
    %v131 = vld [vmem:[%s1 + $0xb4] sm:$0xf]
    %v132 = vld [vmem:[%s1 + $0xb8] sm:$0xf]
    %v133 = vld [vmem:[%s1 + $0xbc] sm:$0xf]
    %v134 = vld [vmem:[%s1 + $0xc0] sm:$0xf]
    %v135 = vld [vmem:[%s1 + $0xc4] sm:$0xf]
    %v136 = vld [vmem:[%s1 + $0xc8] sm:$0xf]
    %v137 = vld [vmem:[%s1 + $0xcc] sm:$0xf]
    %v138 = vld [vmem:[%s1 + $0xd0] sm:$0xf]
    %v139 = vld [vmem:[%s1 + $0xd4] sm:$0xf]
    %v140 = vld [vmem:[%s1 + $0xd8] sm:$0xf]
    %v141 = vld [vmem:[%s1 + $0xdc] sm:$0xf]
    %v142 = vld [vmem:[%s1 + $0xe0] sm:$0xf]
    %v143 = vld [vmem:[%s1 + $0xe4] sm:$0xf]
    %v144 = vld [vmem:[%s1 + $0xe8] sm:$0xf]
    %v145 = vld [vmem:[%s1 + $0xec] sm:$0xf]
    %v146 = vld [vmem:[%s1 + $0xf0] sm:$0xf]
    %v147 = vld [vmem:[%s1 + $0xf4] sm:$0xf]
    %v148 = vld [vmem:[%s1 + $0xf8] sm:$0xf]
    %v149 = vld [vmem:[%s1 + $0xfc] sm:$0xf]
    %v150 = vld [vmem:[%s1 + $0x100] sm:$0xf]
    %v151 = vld [vmem:[%s1 + $0x104] sm:$0xf]
    %v152 = vld [vmem:[%s1 + $0x108] sm:$0xf]
    %v153 = vld [vmem:[%s1 + $0x10c] sm:$0xf]
    %v154 = vld [vmem:[%s1 + $0x110] sm:$0xf]
    %v155 = vld [vmem:[%s1 + $0x114] sm:$0xf]
    %v156 = vld [vmem:[%s1 + $0x118] sm:$0xf]
    %v157 = vld [vmem:[%s1 + $0x11c] sm:$0xf]
    %v158 = vld [vmem:[%s1 + $0x120] sm:$0xf]
    %v159 = vld [vmem:[%s1 + $0x124] sm:$0xf]
    %v160 = vld [vmem:[%s1 + $0x128] sm:$0xf]
    %v161 = vld [vmem:[%s1 + $0x12c] sm:$0xf]
    %v162 = vld [vmem:[%s1 + $0x130] sm:$0xf]
    %v163 = vld [vmem:[%s1 + $0x134] sm:$0xf]
    %v164 = vld [vmem:[%s1 + $0x138] sm:$0xf]
    %v165 = vld [vmem:[%s1 + $0x13c] sm:$0xf]
    %v166 = vld [vmem:[%s1 + $0x140] sm:$0xf]
    %v167 = vld [vmem:[%s1 + $0x144] sm:$0xf]
    %v168 = vld [vmem:[%s1 + $0x148] sm:$0xf]
    %v169 = vld [vmem:[%s1 + $0x14c] sm:$0xf]
    %v170 = vld [vmem:[%s1 + $0x150] sm:$0xf]
    %v171 = vld [vmem:[%s1 + $0x154] sm:$0xf]
    %v172 = vld [vmem:[%s1 + $0x158] sm:$0xf]
    %v173 = vld [vmem:[%s1 + $0x15c] sm:$0xf]
    %v174 = vld [vmem:[%s1 + $0x160] sm:$0xf]
    %v175 = vld [vmem:[%s1 + $0x164] sm:$0xf]
    %v176 = vld [vmem:[%s1 + $0x168] sm:$0xf]
    %v177 = vld [vmem:[%s1 + $0x16c] sm:$0xf]
    %v178 = vld [vmem:[%s1 + $0x170] sm:$0xf]
    %v179 = vld [vmem:[%s1 + $0x174] sm:$0xf]
    %v180 = vld [vmem:[%s1 + $0x178] sm:$0xf]
    %v181 = vld [vmem:[%s1 + $0x17c] sm:$0xf]
    %v182 = vld [vmem:[%s1 + $0x180] sm:$0xf]
    %v183 = vld [vmem:[%s1 + $0x184] sm:$0xf]
    %v184 = vld [vmem:[%s1 + $0x188] sm:$0xf]
    %v185 = vld [vmem:[%s1 + $0x18c] sm:$0xf]
    %v186 = vld [vmem:[%s1 + $0x190] sm:$0xf]
    %v187 = vld [vmem:[%s1 + $0x194] sm:$0xf]
    %v188 = vld [vmem:[%s1 + $0x198] sm:$0xf]
    %v189 = vld [vmem:[%s1 + $0x19c] sm:$0xf]
    %v190 = vld [vmem:[%s1 + $0x1a0] sm:$0xf]
    %v191 = vld [vmem:[%s1 + $0x1a4] sm:$0xf]
    %v192 = vld [vmem:[%s1 + $0x1a8] sm:$0xf]
    %v193 = vld [vmem:[%s1 + $0x1ac] sm:$0xf]
    %v194 = vld [vmem:[%s1 + $0x1b0] sm:$0xf]
    %v195 = vld [vmem:[%s1 + $0x1b4] sm:$0xf]
    %v196 = vld [vmem:[%s1 + $0x1b8] sm:$0xf]
    %v197 = vld [vmem:[%s1 + $0x1bc] sm:$0xf]
    %v198 = vld [vmem:[%s1 + $0x1c0] sm:$0xf]
    %v199 = vld [vmem:[%s1 + $0x1c4] sm:$0xf]
    %v200 = vld [vmem:[%s1 + $0x1c8] sm:$0xf]
    %v201 = vld [vmem:[%s1 + $0x1cc] sm:$0xf]
    %v202 = vld [vmem:[%s1 + $0x1d0] sm:$0xf]
    %v203 = vld [vmem:[%s1 + $0x1d4] sm:$0xf]
    %v204 = vld [vmem:[%s1 + $0x1d8] sm:$0xf]
    %v205 = vld [vmem:[%s1 + $0x1dc] sm:$0xf]
    %v206 = vld [vmem:[%s1 + $0x1e0] sm:$0xf]
    %v207 = vld [vmem:[%s1 + $0x1e4] sm:$0xf]
    %v208 = vld [vmem:[%s1 + $0x1e8] sm:$0xf]
    %v209 = vld [vmem:[%s1 + $0x1ec] sm:$0xf]
    %v210 = vld [vmem:[%s1 + $0x1f0] sm:$0xf]
    %v211 = vld [vmem:[%s1 + $0x1f4] sm:$0xf]
    %v212 = vld [vmem:[%s1 + $0x1f8] sm:$0xf]
    %v213 = vld [vmem:[%s1 + $0x1fc] sm:$0xf]
    %v214 = vld [vmem:[%s1 + $0x200] sm:$0xf]
    %v215 = vld [vmem:[%s1 + $0x204] sm:$0xf]
    %v216 = vld [vmem:[%s1 + $0x208] sm:$0xf]
    %v217 = vld [vmem:[%s1 + $0x20c] sm:$0xf]
    %v218 = vld [vmem:[%s1 + $0x210] sm:$0xf]
    %v219 = vld [vmem:[%s1 + $0x214] sm:$0xf]
    %v220 = vld [vmem:[%s1 + $0x218] sm:$0xf]
    %v221 = vld [vmem:[%s1 + $0x21c] sm:$0xf]
    %v222 = vld [vmem:[%s1 + $0x220] sm:$0xf]
    %v223 = vld [vmem:[%s1 + $0x224] sm:$0xf]
    %v224 = vld [vmem:[%s1 + $0x228] sm:$0xf]
    %v225 = vld [vmem:[%s1 + $0x22c] sm:$0xf]
    %v226 = vld [vmem:[%s1 + $0x230] sm:$0xf]
    %v227 = vld [vmem:[%s1 + $0x234] sm:$0xf]
    %v228 = vld [vmem:[%s1 + $0x238] sm:$0xf]
    %v229 = vld [vmem:[%s1 + $0x23c] sm:$0xf]
    %v230 = vld [vmem:[%s2] sm:$0x1]
    %v232 = vlaneseq
    %v233 = vshrl.u32 %v232, 7
    %v234 = vsub.s32 0, %v233
    %v235 = vrot.slane %v230, %v234
    %v242 = vunpack.c.l.b16 %v81
    %v243 = vunpack.c.h.b16 %v81
    %v244 = vunpack.c.l.b16 %v82
    %v245 = vunpack.c.h.b16 %v82
    %v246 = vunpack.c.l.b16 %v83
    %v247 = vunpack.c.h.b16 %v83
    %v248 = vunpack.c.l.b16 %v84
    %v249 = vunpack.c.h.b16 %v84
    %v250 = vunpack.c.l.b16 %v85
    %v251 = vpack.c.b16 %v242, %v242
    %v252 = vpack.c.b16 %v243, %v243
    %v253 = vpack.c.b16 %v244, %v244
    %v254 = vpack.c.b16 %v245, %v245
    %v255 = vpack.c.b16 %v246, %v246
    %v256 = vpack.c.b16 %v247, %v247
    %v257 = vpack.c.b16 %v248, %v248
    %v258 = vpack.c.b16 %v249, %v249
    %v259 = vpack.c.b16 %v250, %v250
    %v413 = vunpack.c.l.b16 %v86
    %v414 = vunpack.c.l.b16 %v87
    %v415 = vunpack.c.l.b16 %v88
    %v416 = vunpack.c.l.b16 %v89
    %v417 = vunpack.c.l.b16 %v90
    %v418 = vunpack.c.l.b16 %v91
    %v419 = vunpack.c.l.b16 %v92
    %v420 = vunpack.c.l.b16 %v93
    %v421 = vunpack.c.l.b16 %v94
    %v422 = vunpack.c.l.b16 %v95
    %v423 = vunpack.c.l.b16 %v96
    %v424 = vunpack.c.l.b16 %v97
    %v425 = vunpack.c.l.b16 %v98
    %v426 = vunpack.c.l.b16 %v99
    %v427 = vunpack.c.l.b16 %v100
    %v428 = vunpack.c.l.b16 %v101
    %v429 = vunpack.c.l.b16 %v102
    %v430 = vunpack.c.l.b16 %v103
    %v431 = vunpack.c.l.b16 %v104
    %v432 = vunpack.c.l.b16 %v105
    %v433 = vunpack.c.l.b16 %v106
    %v434 = vunpack.c.l.b16 %v107
    %v435 = vunpack.c.l.b16 %v108
    %v436 = vunpack.c.l.b16 %v109
    %v437 = vunpack.c.l.b16 %v110
    %v438 = vunpack.c.l.b16 %v111
    %v439 = vunpack.c.l.b16 %v112
    %v440 = vunpack.c.l.b16 %v113
    %v441 = vunpack.c.l.b16 %v114
    %v442 = vunpack.c.l.b16 %v115
    %v443 = vunpack.c.l.b16 %v116
    %v444 = vunpack.c.l.b16 %v117
    %v445 = vunpack.c.l.b16 %v118
    %v446 = vunpack.c.l.b16 %v119
    %v447 = vunpack.c.l.b16 %v120
    %v448 = vunpack.c.l.b16 %v121
    %v449 = vunpack.c.l.b16 %v122
    %v450 = vunpack.c.l.b16 %v123
    %v451 = vunpack.c.l.b16 %v124
    %v452 = vunpack.c.l.b16 %v125
    %v453 = vunpack.c.l.b16 %v126
    %v454 = vunpack.c.l.b16 %v127
    %v455 = vunpack.c.l.b16 %v128
    %v456 = vunpack.c.l.b16 %v129
    %v457 = vunpack.c.l.b16 %v130
    %v458 = vunpack.c.l.b16 %v131
    %v459 = vunpack.c.l.b16 %v132
    %v460 = vunpack.c.l.b16 %v133
    %v461 = vunpack.c.l.b16 %v134
    %v462 = vunpack.c.l.b16 %v135
    %v463 = vunpack.c.l.b16 %v136
    %v464 = vunpack.c.l.b16 %v137
    %v465 = vunpack.c.l.b16 %v138
    %v466 = vunpack.c.l.b16 %v139
    %v467 = vunpack.c.l.b16 %v140
    %v468 = vunpack.c.l.b16 %v141
    %v469 = vunpack.c.l.b16 %v142
    %v470 = vunpack.c.l.b16 %v143
    %v471 = vunpack.c.l.b16 %v144
    %v472 = vunpack.c.l.b16 %v145
    %v473 = vunpack.c.l.b16 %v146
    %v474 = vunpack.c.l.b16 %v147
    %v475 = vunpack.c.l.b16 %v148
    %v476 = vunpack.c.l.b16 %v149
    %v477 = vunpack.c.l.b16 %v150
    %v478 = vunpack.c.l.b16 %v151
    %v479 = vunpack.c.l.b16 %v152
    %v480 = vunpack.c.l.b16 %v153
    %v481 = vunpack.c.l.b16 %v154
    %v482 = vunpack.c.l.b16 %v155
    %v483 = vunpack.c.l.b16 %v156
    %v484 = vunpack.c.l.b16 %v157
    %v485 = vunpack.c.l.b16 %v158
    %v486 = vunpack.c.l.b16 %v159
    %v487 = vunpack.c.l.b16 %v160
    %v488 = vunpack.c.l.b16 %v161
    %v489 = vunpack.c.l.b16 %v162
    %v490 = vunpack.c.l.b16 %v163
    %v491 = vunpack.c.l.b16 %v164
    %v492 = vunpack.c.l.b16 %v165
    %v493 = vunpack.c.l.b16 %v166
    %v494 = vunpack.c.l.b16 %v167
    %v495 = vunpack.c.l.b16 %v168
    %v496 = vunpack.c.l.b16 %v169
    %v497 = vunpack.c.l.b16 %v170
    %v498 = vunpack.c.l.b16 %v171
    %v499 = vunpack.c.l.b16 %v172
    %v500 = vunpack.c.l.b16 %v173
    %v501 = vunpack.c.l.b16 %v174
    %v502 = vunpack.c.l.b16 %v175
    %v503 = vunpack.c.l.b16 %v176
    %v504 = vunpack.c.l.b16 %v177
    %v505 = vunpack.c.l.b16 %v178
    %v506 = vunpack.c.l.b16 %v179
    %v507 = vunpack.c.l.b16 %v180
    %v508 = vunpack.c.l.b16 %v181
    %v509 = vunpack.c.l.b16 %v182
    %v510 = vunpack.c.l.b16 %v183
    %v511 = vunpack.c.l.b16 %v184
    %v512 = vunpack.c.l.b16 %v185
    %v513 = vunpack.c.l.b16 %v186
    %v514 = vunpack.c.l.b16 %v187
    %v515 = vunpack.c.l.b16 %v188
    %v516 = vunpack.c.l.b16 %v189
    %v517 = vunpack.c.l.b16 %v190
    %v518 = vunpack.c.l.b16 %v191
    %v519 = vunpack.c.l.b16 %v192
    %v520 = vunpack.c.l.b16 %v193
    %v521 = vunpack.c.l.b16 %v194
    %v522 = vunpack.c.l.b16 %v195
    %v523 = vunpack.c.l.b16 %v196
    %v524 = vunpack.c.l.b16 %v197
    %v525 = vunpack.c.l.b16 %v198
    %v526 = vunpack.c.l.b16 %v199
    %v527 = vunpack.c.l.b16 %v200
    %v528 = vunpack.c.l.b16 %v201
    %v529 = vunpack.c.l.b16 %v202
    %v530 = vunpack.c.l.b16 %v203
    %v531 = vunpack.c.l.b16 %v204
    %v532 = vunpack.c.l.b16 %v205
    %v533 = vunpack.c.l.b16 %v206
    %v534 = vunpack.c.l.b16 %v207
    %v535 = vunpack.c.l.b16 %v208
    %v536 = vunpack.c.l.b16 %v209
    %v537 = vunpack.c.l.b16 %v210
    %v538 = vunpack.c.l.b16 %v211
    %v539 = vunpack.c.l.b16 %v212
    %v540 = vunpack.c.l.b16 %v213
    %v541 = vunpack.c.l.b16 %v214
    %v542 = vunpack.c.l.b16 %v215
    %v543 = vunpack.c.l.b16 %v216
    %v544 = vunpack.c.l.b16 %v217
    %v545 = vunpack.c.l.b16 %v218
    %v546 = vunpack.c.l.b16 %v219
    %v547 = vunpack.c.l.b16 %v220
    %v548 = vunpack.c.l.b16 %v221
    %v549 = vunpack.c.l.b16 %v222
    %v550 = vunpack.c.l.b16 %v223
    %v551 = vunpack.c.l.b16 %v224
    %v552 = vunpack.c.l.b16 %v225
    %v553 = vunpack.c.l.b16 %v226
    %v554 = vunpack.c.l.b16 %v227
    %v555 = vunpack.c.l.b16 %v228
    %v556 = vunpack.c.l.b16 %v229
    %v557 = vpack.c.b16 %v414, %v413
    %v558 = vpack.c.b16 %v416, %v415
    %v559 = vpack.c.b16 %v418, %v417
    %v560 = vpack.c.b16 %v420, %v419
    %v561 = vpack.c.b16 %v422, %v421
    %v562 = vpack.c.b16 %v424, %v423
    %v563 = vpack.c.b16 %v426, %v425
    %v564 = vpack.c.b16 %v428, %v427
    %v565 = vpack.c.b16 %v430, %v429
    %v566 = vpack.c.b16 %v432, %v431
    %v567 = vpack.c.b16 %v434, %v433
    %v568 = vpack.c.b16 %v436, %v435
    %v569 = vpack.c.b16 %v438, %v437
    %v570 = vpack.c.b16 %v440, %v439
    %v571 = vpack.c.b16 %v442, %v441
    %v572 = vpack.c.b16 %v444, %v443
    %v573 = vpack.c.b16 %v446, %v445
    %v574 = vpack.c.b16 %v448, %v447
    %v575 = vpack.c.b16 %v450, %v449
    %v576 = vpack.c.b16 %v452, %v451
    %v577 = vpack.c.b16 %v454, %v453
    %v578 = vpack.c.b16 %v456, %v455
    %v579 = vpack.c.b16 %v458, %v457
    %v580 = vpack.c.b16 %v460, %v459
    %v581 = vpack.c.b16 %v462, %v461
    %v582 = vpack.c.b16 %v464, %v463
    %v583 = vpack.c.b16 %v466, %v465
    %v584 = vpack.c.b16 %v468, %v467
    %v585 = vpack.c.b16 %v470, %v469
    %v586 = vpack.c.b16 %v472, %v471
    %v587 = vpack.c.b16 %v474, %v473
    %v588 = vpack.c.b16 %v476, %v475
    %v589 = vpack.c.b16 %v478, %v477
    %v590 = vpack.c.b16 %v480, %v479
    %v591 = vpack.c.b16 %v482, %v481
    %v592 = vpack.c.b16 %v484, %v483
    %v593 = vpack.c.b16 %v486, %v485
    %v594 = vpack.c.b16 %v488, %v487
    %v595 = vpack.c.b16 %v490, %v489
    %v596 = vpack.c.b16 %v492, %v491
    %v597 = vpack.c.b16 %v494, %v493
    %v598 = vpack.c.b16 %v496, %v495
    %v599 = vpack.c.b16 %v498, %v497
    %v600 = vpack.c.b16 %v500, %v499
    %v601 = vpack.c.b16 %v502, %v501
    %v602 = vpack.c.b16 %v504, %v503
    %v603 = vpack.c.b16 %v506, %v505
    %v604 = vpack.c.b16 %v508, %v507
    %v605 = vpack.c.b16 %v510, %v509
    %v606 = vpack.c.b16 %v512, %v511
    %v607 = vpack.c.b16 %v514, %v513
    %v608 = vpack.c.b16 %v516, %v515
    %v609 = vpack.c.b16 %v518, %v517
    %v610 = vpack.c.b16 %v520, %v519
    %v611 = vpack.c.b16 %v522, %v521
    %v612 = vpack.c.b16 %v524, %v523
    %v613 = vpack.c.b16 %v526, %v525
    %v614 = vpack.c.b16 %v528, %v527
    %v615 = vpack.c.b16 %v530, %v529
    %v616 = vpack.c.b16 %v532, %v531
    %v617 = vpack.c.b16 %v534, %v533
    %v618 = vpack.c.b16 %v536, %v535
    %v619 = vpack.c.b16 %v538, %v537
    %v620 = vpack.c.b16 %v540, %v539
    %v621 = vpack.c.b16 %v542, %v541
    %v622 = vpack.c.b16 %v544, %v543
    %v623 = vpack.c.b16 %v546, %v545
    %v624 = vpack.c.b16 %v548, %v547
    %v625 = vpack.c.b16 %v550, %v549
    %v626 = vpack.c.b16 %v552, %v551
    %v627 = vpack.c.b16 %v554, %v553
    %v628 = vpack.c.b16 %v556, %v555
    %701 = vmatprep.subr.bf16.mxu0 0
    %702 = vmatpush1.bf16.msra.mxu0 %v564
    %703 = vmatprep.subr.bf16.mxu0 0
    %704 = vmatpush1.bf16.msra.mxu0 %v563
    %705 = vmatprep.subr.bf16.mxu0 0
    %706 = vmatpush1.bf16.msra.mxu0 %v562
    %707 = vmatprep.subr.bf16.mxu0 0
    %708 = vmatpush1.bf16.msra.mxu0 %v561
    %709 = vmatprep.subr.bf16.mxu0 0
    %710 = vmatpush1.bf16.msra.mxu0 %v560
    %711 = vmatprep.subr.bf16.mxu0 0
    %712 = vmatpush1.bf16.msra.mxu0 %v559
    %713 = vmatprep.subr.bf16.mxu0 0
    %714 = vmatpush1.bf16.msra.mxu0 %v558
    %715 = vmatprep.subr.bf16.mxu0 0
    %716 = vmatpush1.bf16.msra.mxu0 %v557
    %717 = vmatprep.subr.bf16.mxu0 0
    %718 = vmatpush2.bf16.msra.mxu0 %v572
    %719 = vmatprep.subr.bf16.mxu0 0
    %720 = vmatpush2.bf16.msra.mxu0 %v571
    %721 = vmatprep.subr.bf16.mxu0 0
    %722 = vmatpush2.bf16.msra.mxu0 %v570
    %723 = vmatprep.subr.bf16.mxu0 0
    %724 = vmatpush2.bf16.msra.mxu0 %v569
    %725 = vmatprep.subr.bf16.mxu0 0
    %726 = vmatpush2.bf16.msra.mxu0 %v568
    %727 = vmatprep.subr.bf16.mxu0 0
    %728 = vmatpush2.bf16.msra.mxu0 %v567
    %729 = vmatprep.subr.bf16.mxu0 0
    %730 = vmatpush2.bf16.msra.mxu0 %v566
    %731 = vmatprep.subr.bf16.mxu0 0
    %732 = vmatpush2.bf16.msra.mxu0 %v565
    %733 = vmatprep.mubr.bf16.mxu0 %v252
    %734 = vmatmul.mubr.bf16.gmra.mxu0 %v251
    %v735 = vpop.f32.mrf.mxu0
    %v736 = vadd.f32 %v235, %v735
    %v737 = vpop.f32.mrf.mxu0
    %v738 = vpop.f32.mrf.mxu0
    %v739 = vpop.f32.mrf.mxu0
    %740 = vdwg.mxu0
    %741 = vmatprep.subr.bf16.mxu0 0
    %742 = vmatpush1.bf16.msra.mxu0 %v580
    %743 = vmatprep.subr.bf16.mxu0 0
    %744 = vmatpush1.bf16.msra.mxu0 %v579
    %745 = vmatprep.subr.bf16.mxu0 0
    %746 = vmatpush1.bf16.msra.mxu0 %v578
    %747 = vmatprep.subr.bf16.mxu0 0
    %748 = vmatpush1.bf16.msra.mxu0 %v577
    %749 = vmatprep.subr.bf16.mxu0 0
    %750 = vmatpush1.bf16.msra.mxu0 %v576
    %751 = vmatprep.subr.bf16.mxu0 0
    %752 = vmatpush1.bf16.msra.mxu0 %v575
    %753 = vmatprep.subr.bf16.mxu0 0
    %754 = vmatpush1.bf16.msra.mxu0 %v574
    %755 = vmatprep.subr.bf16.mxu0 0
    %756 = vmatpush1.bf16.msra.mxu0 %v573
    %757 = vmatprep.subr.bf16.mxu0 0
    %758 = vmatpush2.bf16.msra.mxu0 %v588
    %759 = vmatprep.subr.bf16.mxu0 0
    %760 = vmatpush2.bf16.msra.mxu0 %v587
    %761 = vmatprep.subr.bf16.mxu0 0
    %762 = vmatpush2.bf16.msra.mxu0 %v586
    %763 = vmatprep.subr.bf16.mxu0 0
    %764 = vmatpush2.bf16.msra.mxu0 %v585
    %765 = vmatprep.subr.bf16.mxu0 0
    %766 = vmatpush2.bf16.msra.mxu0 %v584
    %767 = vmatprep.subr.bf16.mxu0 0
    %768 = vmatpush2.bf16.msra.mxu0 %v583
    %769 = vmatprep.subr.bf16.mxu0 0
    %770 = vmatpush2.bf16.msra.mxu0 %v582
    %771 = vmatprep.subr.bf16.mxu0 0
    %772 = vmatpush2.bf16.msra.mxu0 %v581
    %773 = vmatprep.mubr.bf16.mxu0 %v254
    %774 = vmatmul.mubr.bf16.gmra.mxu0 %v253
    %v775 = vpop.f32.mrf.mxu0
    %v776 = vadd.f32 %v736, %v775
    %v777 = vpop.f32.mrf.mxu0
    %v778 = vpop.f32.mrf.mxu0
    %v779 = vpop.f32.mrf.mxu0
    %780 = vdwg.mxu0
    %781 = vmatprep.subr.bf16.mxu0 0
    %782 = vmatpush1.bf16.msra.mxu0 %v596
    %783 = vmatprep.subr.bf16.mxu0 0
    %784 = vmatpush1.bf16.msra.mxu0 %v595
    %785 = vmatprep.subr.bf16.mxu0 0
    %786 = vmatpush1.bf16.msra.mxu0 %v594
    %787 = vmatprep.subr.bf16.mxu0 0
    %788 = vmatpush1.bf16.msra.mxu0 %v593
    %789 = vmatprep.subr.bf16.mxu0 0
    %790 = vmatpush1.bf16.msra.mxu0 %v592
    %791 = vmatprep.subr.bf16.mxu0 0
    %792 = vmatpush1.bf16.msra.mxu0 %v591
    %793 = vmatprep.subr.bf16.mxu0 0
    %794 = vmatpush1.bf16.msra.mxu0 %v590
    %795 = vmatprep.subr.bf16.mxu0 0
    %796 = vmatpush1.bf16.msra.mxu0 %v589
    %797 = vmatprep.subr.bf16.mxu0 0
    %798 = vmatpush2.bf16.msra.mxu0 %v604
    %799 = vmatprep.subr.bf16.mxu0 0
    %800 = vmatpush2.bf16.msra.mxu0 %v603
    %801 = vmatprep.subr.bf16.mxu0 0
    %802 = vmatpush2.bf16.msra.mxu0 %v602
    %803 = vmatprep.subr.bf16.mxu0 0
    %804 = vmatpush2.bf16.msra.mxu0 %v601
    %805 = vmatprep.subr.bf16.mxu0 0
    %806 = vmatpush2.bf16.msra.mxu0 %v600
    %807 = vmatprep.subr.bf16.mxu0 0
    %808 = vmatpush2.bf16.msra.mxu0 %v599
    %809 = vmatprep.subr.bf16.mxu0 0
    %810 = vmatpush2.bf16.msra.mxu0 %v598
    %811 = vmatprep.subr.bf16.mxu0 0
    %812 = vmatpush2.bf16.msra.mxu0 %v597
    %813 = vmatprep.mubr.bf16.mxu0 %v256
    %814 = vmatmul.mubr.bf16.gmra.mxu0 %v255
    %v815 = vpop.f32.mrf.mxu0
    %v816 = vadd.f32 %v776, %v815
    %v817 = vpop.f32.mrf.mxu0
    %v818 = vpop.f32.mrf.mxu0
    %v819 = vpop.f32.mrf.mxu0
    %820 = vdwg.mxu0
    %821 = vmatprep.subr.bf16.mxu0 0
    %822 = vmatpush1.bf16.msra.mxu0 %v612
    %823 = vmatprep.subr.bf16.mxu0 0
    %824 = vmatpush1.bf16.msra.mxu0 %v611
    %825 = vmatprep.subr.bf16.mxu0 0
    %826 = vmatpush1.bf16.msra.mxu0 %v610
    %827 = vmatprep.subr.bf16.mxu0 0
    %828 = vmatpush1.bf16.msra.mxu0 %v609
    %829 = vmatprep.subr.bf16.mxu0 0
    %830 = vmatpush1.bf16.msra.mxu0 %v608
    %831 = vmatprep.subr.bf16.mxu0 0
    %832 = vmatpush1.bf16.msra.mxu0 %v607
    %833 = vmatprep.subr.bf16.mxu0 0
    %834 = vmatpush1.bf16.msra.mxu0 %v606
    %835 = vmatprep.subr.bf16.mxu0 0
    %836 = vmatpush1.bf16.msra.mxu0 %v605
    %837 = vmatprep.subr.bf16.mxu0 0
    %838 = vmatpush2.bf16.msra.mxu0 %v620
    %839 = vmatprep.subr.bf16.mxu0 0
    %840 = vmatpush2.bf16.msra.mxu0 %v619
    %841 = vmatprep.subr.bf16.mxu0 0
    %842 = vmatpush2.bf16.msra.mxu0 %v618
    %843 = vmatprep.subr.bf16.mxu0 0
    %844 = vmatpush2.bf16.msra.mxu0 %v617
    %845 = vmatprep.subr.bf16.mxu0 0
    %846 = vmatpush2.bf16.msra.mxu0 %v616
    %847 = vmatprep.subr.bf16.mxu0 0
    %848 = vmatpush2.bf16.msra.mxu0 %v615
    %849 = vmatprep.subr.bf16.mxu0 0
    %850 = vmatpush2.bf16.msra.mxu0 %v614
    %851 = vmatprep.subr.bf16.mxu0 0
    %852 = vmatpush2.bf16.msra.mxu0 %v613
    %853 = vmatprep.mubr.bf16.mxu0 %v258
    %854 = vmatmul.mubr.bf16.gmra.mxu0 %v257
    %v855 = vpop.f32.mrf.mxu0
    %v856 = vadd.f32 %v816, %v855
    %v857 = vpop.f32.mrf.mxu0
    %v858 = vpop.f32.mrf.mxu0
    %v859 = vpop.f32.mrf.mxu0
    %860 = vdwg.mxu0
    %861 = vmatprep.subr.bf16.mxu0 0
    %862 = vmatpush1.bf16.msra.mxu0 %v628
    %863 = vmatprep.subr.bf16.mxu0 0
    %864 = vmatpush1.bf16.msra.mxu0 %v627
    %865 = vmatprep.subr.bf16.mxu0 0
    %866 = vmatpush1.bf16.msra.mxu0 %v626
    %867 = vmatprep.subr.bf16.mxu0 0
    %868 = vmatpush1.bf16.msra.mxu0 %v625
    %869 = vmatprep.subr.bf16.mxu0 0
    %870 = vmatpush1.bf16.msra.mxu0 %v624
    %871 = vmatprep.subr.bf16.mxu0 0
    %872 = vmatpush1.bf16.msra.mxu0 %v623
    %873 = vmatprep.subr.bf16.mxu0 0
    %874 = vmatpush1.bf16.msra.mxu0 %v622
    %875 = vmatprep.subr.bf16.mxu0 0
    %876 = vmatpush1.bf16.msra.mxu0 %v621
    %877 = vmatprep.subr.bf16.mxu0 0
    %878 = vmatpush2.bf16.msra.mxu0 0
    %879 = vmatprep.subr.bf16.mxu0 0
    %880 = vmatpush2.bf16.msra.mxu0 0
    %881 = vmatprep.subr.bf16.mxu0 0
    %882 = vmatpush2.bf16.msra.mxu0 0
    %883 = vmatprep.subr.bf16.mxu0 0
    %884 = vmatpush2.bf16.msra.mxu0 0
    %885 = vmatprep.subr.bf16.mxu0 0
    %886 = vmatpush2.bf16.msra.mxu0 0
    %887 = vmatprep.subr.bf16.mxu0 0
    %888 = vmatpush2.bf16.msra.mxu0 0
    %889 = vmatprep.subr.bf16.mxu0 0
    %890 = vmatpush2.bf16.msra.mxu0 0
    %891 = vmatprep.subr.bf16.mxu0 0
    %892 = vmatpush2.bf16.msra.mxu0 0
    %893 = vmatprep.mubr.bf16.mxu0 0
    %894 = vmatmul.mubr.bf16.gmra.mxu0 %v259
    %v895 = vpop.f32.mrf.mxu0
    %v896 = vadd.f32 %v856, %v895
    %v897 = vpop.f32.mrf.mxu0
    %v898 = vpop.f32.mrf.mxu0
    %v899 = vpop.f32.mrf.mxu0
    %900 = vdwg.mxu0
    %s901 = sld [smem:[#allocation2]]
    %s902 = sld [smem:[#allocation2 + $0x1]]
    %s903 = sld [smem:[#allocation2 + $0x2]]
    %s904 = sld [smem:[#allocation2 + $0x3]]
    %s905 = sld [smem:[#allocation2 + $0x4]]
    %s906 = sld [smem:[#allocation2 + $0x5]]
    %s907 = sld [smem:[#allocation2 + $0x6]]
    %s908 = sld [smem:[#allocation2 + $0x7]]
    %s909 = sld [smem:[#allocation2 + $0x8]]
    %s910 = sld [smem:[#allocation2 + $0x9]]
    %s911 = sld [smem:[#allocation2 + $0xa]]
    %s912 = sld [smem:[#allocation2 + $0xb]]
    %s913 = sld [smem:[#allocation2 + $0xc]]
    %s914 = sld [smem:[#allocation2 + $0xd]]
    %s915 = sld [smem:[#allocation2 + $0xe]]
    %s916 = sld [smem:[#allocation2 + $0xf]]
    %v917 = vstv %s65
    %v918 = vsub.f32 %v896, %v917
    %v919 = vmax.f32 %v918, 0.0
    %v920 = vstv %s901
    %v921 = vmul.f32 %v920, %v919
    %v922 = vstv %s66
    %v923 = vsub.f32 %v896, %v922
    %v924 = vmax.f32 %v923, 0.0
    %v925 = vstv %s902
    %v926 = vmul.f32 %v925, %v924
    %v927 = vstv %s67
    %v928 = vsub.f32 %v896, %v927
    %v929 = vmax.f32 %v928, 0.0
    %v930 = vstv %s903
    %v931 = vmul.f32 %v930, %v929
    %v932 = vadd.f32 %v921, %v931
    %v933 = vstv %s68
    %v934 = vsub.f32 %v896, %v933
    %v935 = vmax.f32 %v934, 0.0
    %v936 = vstv %s904
    %v937 = vmul.f32 %v936, %v935
    %v938 = vadd.f32 %v926, %v937
    %v939 = vstv %s69
    %v940 = vsub.f32 %v896, %v939
    %v941 = vmax.f32 %v940, 0.0
    %v942 = vstv %s905
    %v943 = vmul.f32 %v942, %v941
    %v944 = vadd.f32 %v932, %v943
    %v945 = vstv %s70
    %v946 = vsub.f32 %v896, %v945
    %v947 = vmax.f32 %v946, 0.0
    %v948 = vstv %s906
    %v949 = vmul.f32 %v948, %v947
    %v950 = vadd.f32 %v938, %v949
    %v951 = vstv %s71
    %v952 = vsub.f32 %v896, %v951
    %v953 = vmax.f32 %v952, 0.0
    %v954 = vstv %s907
    %v955 = vmul.f32 %v954, %v953
    %v956 = vadd.f32 %v944, %v955
    %v957 = vstv %s72
    %v958 = vsub.f32 %v896, %v957
    %v959 = vmax.f32 %v958, 0.0
    %v960 = vstv %s908
    %v961 = vmul.f32 %v960, %v959
    %v962 = vadd.f32 %v950, %v961
    %v963 = vstv %s73
    %v964 = vsub.f32 %v896, %v963
    %v965 = vmax.f32 %v964, 0.0
    %v966 = vstv %s909
    %v967 = vmul.f32 %v966, %v965
    %v968 = vadd.f32 %v956, %v967
    %v969 = vstv %s74
    %v970 = vsub.f32 %v896, %v969
    %v971 = vmax.f32 %v970, 0.0
    %v972 = vstv %s910
    %v973 = vmul.f32 %v972, %v971
    %v974 = vadd.f32 %v962, %v973
    %v975 = vstv %s75
    %v976 = vsub.f32 %v896, %v975
    %v977 = vmax.f32 %v976, 0.0
    %v978 = vstv %s911
    %v979 = vmul.f32 %v978, %v977
    %v980 = vadd.f32 %v968, %v979
    %v981 = vstv %s76
    %v982 = vsub.f32 %v896, %v981
    %v983 = vmax.f32 %v982, 0.0
    %v984 = vstv %s912
    %v985 = vmul.f32 %v984, %v983
    %v986 = vadd.f32 %v974, %v985
    %v987 = vstv %s77
    %v988 = vsub.f32 %v896, %v987
    %v989 = vmax.f32 %v988, 0.0
    %v990 = vstv %s913
    %v991 = vmul.f32 %v990, %v989
    %v992 = vadd.f32 %v980, %v991
    %v993 = vstv %s78
    %v994 = vsub.f32 %v896, %v993
    %v995 = vmax.f32 %v994, 0.0
    %v996 = vstv %s914
    %v997 = vmul.f32 %v996, %v995
    %v998 = vadd.f32 %v986, %v997
    %v999 = vstv %s79
    %v1000 = vsub.f32 %v896, %v999
    %v1001 = vmax.f32 %v1000, 0.0
    %v1002 = vstv %s915
    %v1003 = vmul.f32 %v1002, %v1001
    %v1004 = vadd.f32 %v992, %v1003
    %v1005 = vstv %s80
    %v1006 = vsub.f32 %v896, %v1005
    %v1007 = vmax.f32 %v1006, 0.0
    %v1008 = vstv %s916
    %v1009 = vmul.f32 %v1008, %v1007
    %v1010 = vadd.f32 %v998, %v1009
    %v1011 = vadd.f32 %v1004, %v1010
    %v1012 = vpack.c.bf16 %v1011, %v1011
    %v1013 = vld [vmem:[%s3] sm:$0xf]
    %v1014 = vld [vmem:[%s3 + $0x4] sm:$0xf]
    %v1015 = vld [vmem:[%s3 + $0x8] sm:$0xf]
    %v1016 = vld [vmem:[%s3 + $0xc] sm:$0xf]
    %v1017 = vld [vmem:[%s4] sm:$0x1]
    %v1019 = vlaneseq
    %v1020 = vshrl.u32 %v1019, 7
    %v1021 = vsub.s32 0, %v1020
    %v1022 = vrot.slane %v1017, %v1021
    %v1028 = vunpack.c.l.b16 %v1013
    %v1029 = vunpack.c.l.b16 %v1014
    %v1030 = vunpack.c.l.b16 %v1015
    %v1031 = vunpack.c.l.b16 %v1016
    %v1032 = vpack.c.b16 %v1029, %v1028
    %v1033 = vpack.c.b16 %v1031, %v1030
    %vm1036 = vcmask 261120
    %v1038 = vsel %vm1036, %v1012, 0
    %1040 = vmatprep.subr.bf16.mxu0 0
    %1041 = vmatpush1.bf16.msra.mxu0 0
    %1042 = vmatprep.subr.bf16.mxu0 0
    %1043 = vmatpush1.bf16.msra.mxu0 0
    %1044 = vmatprep.subr.bf16.mxu0 0
    %1045 = vmatpush1.bf16.msra.mxu0 0
    %1046 = vmatprep.subr.bf16.mxu0 0
    %1047 = vmatpush1.bf16.msra.mxu0 0
    %1048 = vmatprep.subr.bf16.mxu0 0
    %1049 = vmatpush1.bf16.msra.mxu0 0
    %1050 = vmatprep.subr.bf16.mxu0 0
    %1051 = vmatpush1.bf16.msra.mxu0 0
    %1052 = vmatprep.subr.bf16.mxu0 0
    %1053 = vmatpush1.bf16.msra.mxu0 %v1033
    %1054 = vmatprep.subr.bf16.mxu0 0
    %1055 = vmatpush1.bf16.msra.mxu0 %v1032
    %1056 = vmatprep.subr.bf16.mxu0 0
    %1057 = vmatpush2.bf16.msra.mxu0 0
    %1058 = vmatprep.subr.bf16.mxu0 0
    %1059 = vmatpush2.bf16.msra.mxu0 0
    %1060 = vmatprep.subr.bf16.mxu0 0
    %1061 = vmatpush2.bf16.msra.mxu0 0
    %1062 = vmatprep.subr.bf16.mxu0 0
    %1063 = vmatpush2.bf16.msra.mxu0 0
    %1064 = vmatprep.subr.bf16.mxu0 0
    %1065 = vmatpush2.bf16.msra.mxu0 0
    %1066 = vmatprep.subr.bf16.mxu0 0
    %1067 = vmatpush2.bf16.msra.mxu0 0
    %1068 = vmatprep.subr.bf16.mxu0 0
    %1069 = vmatpush2.bf16.msra.mxu0 0
    %1070 = vmatprep.subr.bf16.mxu0 0
    %1071 = vmatpush2.bf16.msra.mxu0 0
    %1072 = vmatprep.mubr.bf16.mxu0 0
    %1073 = vmatmul.mubr.bf16.gmra.mxu0 %v1038
    %v1074 = vpop.f32.mrf.mxu0
    %v1075 = vadd.f32 %v1022, %v1074
    %v1076 = vpop.f32.mrf.mxu0
    %v1077 = vpop.f32.mrf.mxu0
    %v1078 = vpop.f32.mrf.mxu0
    %1079 = vdwg.mxu0
    %s1080 = sld [smem:[#allocation2 + $0x80]]
    %s1081 = sld [smem:[#allocation2 + $0x81]]
    %s1082 = sld [smem:[#allocation2 + $0x82]]
    %s1083 = sld [smem:[#allocation2 + $0x83]]
    %s1084 = sld [smem:[#allocation2 + $0x84]]
    %s1085 = sld [smem:[#allocation2 + $0x85]]
    %s1086 = sld [smem:[#allocation2 + $0x86]]
    %s1087 = sld [smem:[#allocation2 + $0x87]]
    %s1088 = sld [smem:[#allocation2 + $0x88]]
    %s1089 = sld [smem:[#allocation2 + $0x89]]
    %s1090 = sld [smem:[#allocation2 + $0x8a]]
    %s1091 = sld [smem:[#allocation2 + $0x8b]]
    %s1092 = sld [smem:[#allocation2 + $0x8c]]
    %s1093 = sld [smem:[#allocation2 + $0x8d]]
    %s1094 = sld [smem:[#allocation2 + $0x8e]]
    %s1095 = sld [smem:[#allocation2 + $0x8f]]
    %v1096 = vsub.f32 %v1075, %v917
    %v1097 = vmax.f32 %v1096, 0.0
    %v1098 = vstv %s1080
    %v1099 = vmul.f32 %v1098, %v1097
    %v1100 = vsub.f32 %v1075, %v922
    %v1101 = vmax.f32 %v1100, 0.0
    %v1102 = vstv %s1081
    %v1103 = vmul.f32 %v1102, %v1101
    %v1104 = vsub.f32 %v1075, %v927
    %v1105 = vmax.f32 %v1104, 0.0
    %v1106 = vstv %s1082
    %v1107 = vmul.f32 %v1106, %v1105
    %v1108 = vadd.f32 %v1099, %v1107
    %v1109 = vsub.f32 %v1075, %v933
    %v1110 = vmax.f32 %v1109, 0.0
    %v1111 = vstv %s1083
    %v1112 = vmul.f32 %v1111, %v1110
    %v1113 = vadd.f32 %v1103, %v1112
    %v1114 = vsub.f32 %v1075, %v939
    %v1115 = vmax.f32 %v1114, 0.0
    %v1116 = vstv %s1084
    %v1117 = vmul.f32 %v1116, %v1115
    %v1118 = vadd.f32 %v1108, %v1117
    %v1119 = vsub.f32 %v1075, %v945
    %v1120 = vmax.f32 %v1119, 0.0
    %v1121 = vstv %s1085
    %v1122 = vmul.f32 %v1121, %v1120
    %v1123 = vadd.f32 %v1113, %v1122
    %v1124 = vsub.f32 %v1075, %v951
    %v1125 = vmax.f32 %v1124, 0.0
    %v1126 = vstv %s1086
    %v1127 = vmul.f32 %v1126, %v1125
    %v1128 = vadd.f32 %v1118, %v1127
    %v1129 = vsub.f32 %v1075, %v957
    %v1130 = vmax.f32 %v1129, 0.0
    %v1131 = vstv %s1087
    %v1132 = vmul.f32 %v1131, %v1130
    %v1133 = vadd.f32 %v1123, %v1132
    %v1134 = vsub.f32 %v1075, %v963
    %v1135 = vmax.f32 %v1134, 0.0
    %v1136 = vstv %s1088
    %v1137 = vmul.f32 %v1136, %v1135
    %v1138 = vadd.f32 %v1128, %v1137
    %v1139 = vsub.f32 %v1075, %v969
    %v1140 = vmax.f32 %v1139, 0.0
    %v1141 = vstv %s1089
    %v1142 = vmul.f32 %v1141, %v1140
    %v1143 = vadd.f32 %v1133, %v1142
    %v1144 = vsub.f32 %v1075, %v975
    %v1145 = vmax.f32 %v1144, 0.0
    %v1146 = vstv %s1090
    %v1147 = vmul.f32 %v1146, %v1145
    %v1148 = vadd.f32 %v1138, %v1147
    %v1149 = vsub.f32 %v1075, %v981
    %v1150 = vmax.f32 %v1149, 0.0
    %v1151 = vstv %s1091
    %v1152 = vmul.f32 %v1151, %v1150
    %v1153 = vadd.f32 %v1143, %v1152
    %v1154 = vsub.f32 %v1075, %v987
    %v1155 = vmax.f32 %v1154, 0.0
    %v1156 = vstv %s1092
    %v1157 = vmul.f32 %v1156, %v1155
    %v1158 = vadd.f32 %v1148, %v1157
    %v1159 = vsub.f32 %v1075, %v993
    %v1160 = vmax.f32 %v1159, 0.0
    %v1161 = vstv %s1093
    %v1162 = vmul.f32 %v1161, %v1160
    %v1163 = vadd.f32 %v1153, %v1162
    %v1164 = vsub.f32 %v1075, %v999
    %v1165 = vmax.f32 %v1164, 0.0
    %v1166 = vstv %s1094
    %v1167 = vmul.f32 %v1166, %v1165
    %v1168 = vadd.f32 %v1158, %v1167
    %v1169 = vsub.f32 %v1075, %v1005
    %v1170 = vmax.f32 %v1169, 0.0
    %v1171 = vstv %s1095
    %v1172 = vmul.f32 %v1171, %v1170
    %v1173 = vadd.f32 %v1163, %v1172
    %v1174 = vadd.f32 %v1168, %v1173
    %v1175 = vpack.c.bf16 %v1174, %v1174
    %v1176 = vld [vmem:[%s5] sm:$0xf]
    %v1177 = vld [vmem:[%s5 + $0x4] sm:$0xf]
    %v1178 = vld [vmem:[%s5 + $0x8] sm:$0xf]
    %v1179 = vld [vmem:[%s5 + $0xc] sm:$0xf]
    %v1180 = vld [vmem:[%s6] sm:$0x1]
    %v1182 = vlaneseq
    %v1183 = vshrl.u32 %v1182, 7
    %v1184 = vsub.s32 0, %v1183
    %v1185 = vrot.slane %v1180, %v1184
    %v1191 = vunpack.c.l.b16 %v1176
    %v1192 = vunpack.c.l.b16 %v1177
    %v1193 = vunpack.c.l.b16 %v1178
    %v1194 = vunpack.c.l.b16 %v1179
    %v1195 = vpack.c.b16 %v1192, %v1191
    %v1196 = vpack.c.b16 %v1194, %v1193
    %v1200 = vsel %vm1036, %v1175, 0
    %1202 = vmatprep.subr.bf16.mxu0 0
    %1203 = vmatpush1.bf16.msra.mxu0 0
    %1204 = vmatprep.subr.bf16.mxu0 0
    %1205 = vmatpush1.bf16.msra.mxu0 0
    %1206 = vmatprep.subr.bf16.mxu0 0
    %1207 = vmatpush1.bf16.msra.mxu0 0
    %1208 = vmatprep.subr.bf16.mxu0 0
    %1209 = vmatpush1.bf16.msra.mxu0 0
    %1210 = vmatprep.subr.bf16.mxu0 0
    %1211 = vmatpush1.bf16.msra.mxu0 0
    %1212 = vmatprep.subr.bf16.mxu0 0
    %1213 = vmatpush1.bf16.msra.mxu0 0
    %1214 = vmatprep.subr.bf16.mxu0 0
    %1215 = vmatpush1.bf16.msra.mxu0 %v1196
    %1216 = vmatprep.subr.bf16.mxu0 0
    %1217 = vmatpush1.bf16.msra.mxu0 %v1195
    %1218 = vmatprep.subr.bf16.mxu0 0
    %1219 = vmatpush2.bf16.msra.mxu0 0
    %1220 = vmatprep.subr.bf16.mxu0 0
    %1221 = vmatpush2.bf16.msra.mxu0 0
    %1222 = vmatprep.subr.bf16.mxu0 0
    %1223 = vmatpush2.bf16.msra.mxu0 0
    %1224 = vmatprep.subr.bf16.mxu0 0
    %1225 = vmatpush2.bf16.msra.mxu0 0
    %1226 = vmatprep.subr.bf16.mxu0 0
    %1227 = vmatpush2.bf16.msra.mxu0 0
    %1228 = vmatprep.subr.bf16.mxu0 0
    %1229 = vmatpush2.bf16.msra.mxu0 0
    %1230 = vmatprep.subr.bf16.mxu0 0
    %1231 = vmatpush2.bf16.msra.mxu0 0
    %1232 = vmatprep.subr.bf16.mxu0 0
    %1233 = vmatpush2.bf16.msra.mxu0 0
    %1234 = vmatprep.mubr.bf16.mxu0 0
    %1235 = vmatmul.mubr.bf16.gmra.mxu0 %v1200
    %v1236 = vpop.f32.mrf.mxu0
    %v1237 = vadd.f32 %v1185, %v1236
    %v1238 = vpop.f32.mrf.mxu0
    %v1239 = vpop.f32.mrf.mxu0
    %v1240 = vpop.f32.mrf.mxu0
    %1241 = vdwg.mxu0
    %s1242 = sld [smem:[#allocation2 + $0x100]]
    %s1243 = sld [smem:[#allocation2 + $0x101]]
    %s1244 = sld [smem:[#allocation2 + $0x102]]
    %s1245 = sld [smem:[#allocation2 + $0x103]]
    %s1246 = sld [smem:[#allocation2 + $0x104]]
    %s1247 = sld [smem:[#allocation2 + $0x105]]
    %s1248 = sld [smem:[#allocation2 + $0x106]]
    %s1249 = sld [smem:[#allocation2 + $0x107]]
    %s1250 = sld [smem:[#allocation2 + $0x108]]
    %s1251 = sld [smem:[#allocation2 + $0x109]]
    %s1252 = sld [smem:[#allocation2 + $0x10a]]
    %s1253 = sld [smem:[#allocation2 + $0x10b]]
    %s1254 = sld [smem:[#allocation2 + $0x10c]]
    %s1255 = sld [smem:[#allocation2 + $0x10d]]
    %s1256 = sld [smem:[#allocation2 + $0x10e]]
    %s1257 = sld [smem:[#allocation2 + $0x10f]]
    %v1258 = vsub.f32 %v1237, %v917
    %v1259 = vmax.f32 %v1258, 0.0
    %v1260 = vstv %s1242
    %v1261 = vmul.f32 %v1260, %v1259
    %v1262 = vsub.f32 %v1237, %v922
    %v1263 = vmax.f32 %v1262, 0.0
    %v1264 = vstv %s1243
    %v1265 = vmul.f32 %v1264, %v1263
    %v1266 = vsub.f32 %v1237, %v927
    %v1267 = vmax.f32 %v1266, 0.0
    %v1268 = vstv %s1244
    %v1269 = vmul.f32 %v1268, %v1267
    %v1270 = vadd.f32 %v1261, %v1269
    %v1271 = vsub.f32 %v1237, %v933
    %v1272 = vmax.f32 %v1271, 0.0
    %v1273 = vstv %s1245
    %v1274 = vmul.f32 %v1273, %v1272
    %v1275 = vadd.f32 %v1265, %v1274
    %v1276 = vsub.f32 %v1237, %v939
    %v1277 = vmax.f32 %v1276, 0.0
    %v1278 = vstv %s1246
    %v1279 = vmul.f32 %v1278, %v1277
    %v1280 = vadd.f32 %v1270, %v1279
    %v1281 = vsub.f32 %v1237, %v945
    %v1282 = vmax.f32 %v1281, 0.0
    %v1283 = vstv %s1247
    %v1284 = vmul.f32 %v1283, %v1282
    %v1285 = vadd.f32 %v1275, %v1284
    %v1286 = vsub.f32 %v1237, %v951
    %v1287 = vmax.f32 %v1286, 0.0
    %v1288 = vstv %s1248
    %v1289 = vmul.f32 %v1288, %v1287
    %v1290 = vadd.f32 %v1280, %v1289
    %v1291 = vsub.f32 %v1237, %v957
    %v1292 = vmax.f32 %v1291, 0.0
    %v1293 = vstv %s1249
    %v1294 = vmul.f32 %v1293, %v1292
    %v1295 = vadd.f32 %v1285, %v1294
    %v1296 = vsub.f32 %v1237, %v963
    %v1297 = vmax.f32 %v1296, 0.0
    %v1298 = vstv %s1250
    %v1299 = vmul.f32 %v1298, %v1297
    %v1300 = vadd.f32 %v1290, %v1299
    %v1301 = vsub.f32 %v1237, %v969
    %v1302 = vmax.f32 %v1301, 0.0
    %v1303 = vstv %s1251
    %v1304 = vmul.f32 %v1303, %v1302
    %v1305 = vadd.f32 %v1295, %v1304
    %v1306 = vsub.f32 %v1237, %v975
    %v1307 = vmax.f32 %v1306, 0.0
    %v1308 = vstv %s1252
    %v1309 = vmul.f32 %v1308, %v1307
    %v1310 = vadd.f32 %v1300, %v1309
    %v1311 = vsub.f32 %v1237, %v981
    %v1312 = vmax.f32 %v1311, 0.0
    %v1313 = vstv %s1253
    %v1314 = vmul.f32 %v1313, %v1312
    %v1315 = vadd.f32 %v1305, %v1314
    %v1316 = vsub.f32 %v1237, %v987
    %v1317 = vmax.f32 %v1316, 0.0
    %v1318 = vstv %s1254
    %v1319 = vmul.f32 %v1318, %v1317
    %v1320 = vadd.f32 %v1310, %v1319
    %v1321 = vsub.f32 %v1237, %v993
    %v1322 = vmax.f32 %v1321, 0.0
    %v1323 = vstv %s1255
    %v1324 = vmul.f32 %v1323, %v1322
    %v1325 = vadd.f32 %v1315, %v1324
    %v1326 = vsub.f32 %v1237, %v999
    %v1327 = vmax.f32 %v1326, 0.0
    %v1328 = vstv %s1256
    %v1329 = vmul.f32 %v1328, %v1327
    %v1330 = vadd.f32 %v1320, %v1329
    %v1331 = vsub.f32 %v1237, %v1005
    %v1332 = vmax.f32 %v1331, 0.0
    %v1333 = vstv %s1257
    %v1334 = vmul.f32 %v1333, %v1332
    %v1335 = vadd.f32 %v1325, %v1334
    %v1336 = vadd.f32 %v1330, %v1335
    %v1337 = vpack.c.bf16 %v1336, %v1336
    %v1338 = vld [vmem:[%s7] sm:$0xf]
    %v1339 = vld [vmem:[%s7 + $0x4] sm:$0xf]
    %v1340 = vld [vmem:[%s7 + $0x8] sm:$0xf]
    %v1341 = vld [vmem:[%s7 + $0xc] sm:$0xf]
    %v1342 = vld [vmem:[%s8] sm:$0x1]
    %v1344 = vlaneseq
    %v1345 = vshrl.u32 %v1344, 7
    %v1346 = vsub.s32 0, %v1345
    %v1347 = vrot.slane %v1342, %v1346
    %v1353 = vunpack.c.l.b16 %v1338
    %v1354 = vunpack.c.l.b16 %v1339
    %v1355 = vunpack.c.l.b16 %v1340
    %v1356 = vunpack.c.l.b16 %v1341
    %v1357 = vpack.c.b16 %v1354, %v1353
    %v1358 = vpack.c.b16 %v1356, %v1355
    %v1362 = vsel %vm1036, %v1337, 0
    %1364 = vmatprep.subr.bf16.mxu0 0
    %1365 = vmatpush1.bf16.msra.mxu0 0
    %1366 = vmatprep.subr.bf16.mxu0 0
    %1367 = vmatpush1.bf16.msra.mxu0 0
    %1368 = vmatprep.subr.bf16.mxu0 0
    %1369 = vmatpush1.bf16.msra.mxu0 0
    %1370 = vmatprep.subr.bf16.mxu0 0
    %1371 = vmatpush1.bf16.msra.mxu0 0
    %1372 = vmatprep.subr.bf16.mxu0 0
    %1373 = vmatpush1.bf16.msra.mxu0 0
    %1374 = vmatprep.subr.bf16.mxu0 0
    %1375 = vmatpush1.bf16.msra.mxu0 0
    %1376 = vmatprep.subr.bf16.mxu0 0
    %1377 = vmatpush1.bf16.msra.mxu0 %v1358
    %1378 = vmatprep.subr.bf16.mxu0 0
    %1379 = vmatpush1.bf16.msra.mxu0 %v1357
    %1380 = vmatprep.subr.bf16.mxu0 0
    %1381 = vmatpush2.bf16.msra.mxu0 0
    %1382 = vmatprep.subr.bf16.mxu0 0
    %1383 = vmatpush2.bf16.msra.mxu0 0
    %1384 = vmatprep.subr.bf16.mxu0 0
    %1385 = vmatpush2.bf16.msra.mxu0 0
    %1386 = vmatprep.subr.bf16.mxu0 0
    %1387 = vmatpush2.bf16.msra.mxu0 0
    %1388 = vmatprep.subr.bf16.mxu0 0
    %1389 = vmatpush2.bf16.msra.mxu0 0
    %1390 = vmatprep.subr.bf16.mxu0 0
    %1391 = vmatpush2.bf16.msra.mxu0 0
    %1392 = vmatprep.subr.bf16.mxu0 0
    %1393 = vmatpush2.bf16.msra.mxu0 0
    %1394 = vmatprep.subr.bf16.mxu0 0
    %1395 = vmatpush2.bf16.msra.mxu0 0
    %1396 = vmatprep.mubr.bf16.mxu0 0
    %1397 = vmatmul.mubr.bf16.gmra.mxu0 %v1362
    %v1398 = vpop.f32.mrf.mxu0
    %v1399 = vadd.f32 %v1347, %v1398
    %v1400 = vpop.f32.mrf.mxu0
    %v1401 = vpop.f32.mrf.mxu0
    %v1402 = vpop.f32.mrf.mxu0
    %1403 = vdwg.mxu0
    %1404 = vst [vmem:[#allocation7] sm:$0xff] %v1399
    // Predicated region
    $region54: #{tpu_custom_call.1} parent=1 // pred_check
      _
    $region55: #{tpu_custom_call.1} parent=1 // pred_check_branch
      %1406 = sbr.rel (0) target = $region57
    $region56: #{tpu_custom_call.1} parent=1 // pred_region
      %s1408 = ssub.s32 128, 128
      %1409 = vsyncadd [#allocation3], %s1408
      %s1411 = sshll.u32 [#allocation7], 4
      %s1412 = int_to_ptr.vmem [resolvable:$true] %s1411
      %1414 = dma.vmem_to_hbm [thread:$0]  %s1412, 128, %s11, [#allocation3]
    $region57: #{tpu_custom_call.1} parent=1 // pred_fallthru
      _
    // Predicated region
    $region58: #{tpu_custom_call.1} parent=1 // pred_check
      _
    $region59: #{tpu_custom_call.1} parent=1 // pred_check_branch
      %1416 = sbr.rel (0) target = $region61
    $region60: #{tpu_custom_call.1} parent=1 // pred_region
      %1417 = dma.done [#allocation3], 128
    $region61: #{tpu_custom_call.1} parent=1 // pred_fallthru
      _
    %1418 = vsyncpa [#allocation3], 1
    %1419 = vsyncpa [#allocation4], 1
    %1420 = vsyncpa [#allocation6], 1

</llo_original>
